<compile_context>
chip_gen: v7x
topology: tpu7x:2x2x1
jax: 0.10.0
libtpu: 0.0.40
codegen_flags: <defaults>
</compile_context>

<pallas_src>
import jax
import jax.numpy as jnp
from jax import lax
from jax.experimental import pallas as pl
from jax.experimental.pallas import tpu as pltpu


def _round_up(x, m):
    return (x + m - 1) // m * m


def _bilstm_head_kernel(x_idx_ref, emb_tbl_ref, wih_ref, b_ref, whh_ref,
                        wlin_f_ref, wlin_b_ref, blin_ref, out_ref, emb_buf):
    # x_idx_ref:   (B, T) int32, SMEM       word ids
    # emb_tbl_ref: (n_word, D) f32, VMEM    embedding table
    # wih_ref:     (D, 8H)                  [W_ih_fwd | W_ih_bwd], gate order i,f,g,o
    # b_ref:       (1, 8H)                  [b_fwd | b_bwd] (b_ih + b_hh folded)
    # whh_ref:     (H, 4H)                  forward-direction recurrent weights
    # wlin_*_ref:  (H, P); blin_ref: (1, P) linear head split per direction
    # out_ref:     (B, P)
    # emb_buf:     (T*BP, D) VMEM scratch   time-major, batch rows padded to BP
    B, T = x_idx_ref.shape
    H = whh_ref.shape[0]
    TBP = emb_buf.shape[0]
    BP = TBP // T

    # ---- In-kernel embedding gather into the padded time-major layout the
    # recurrence wants.  Padding rows are zeroed once so every later slice is
    # tile aligned and garbage-free (rows never mix: matmul/elementwise keep
    # row r of the output a function of row r of the input only).
    emb_buf[...] = jnp.zeros_like(emb_buf)
    for t in range(T):
        for b in range(B):
            idx = x_idx_ref[b, t]                                  # SMEM scalar
            emb_buf[pl.ds(t * BP + b, 1), :] = emb_tbl_ref[pl.ds(idx, 1), :]

    # ---- Both directions' input projections + bias in ONE MXU call, hoisted
    # off the serial critical path: (T*BP, D) @ (D, 8H) -> (T*BP, 8H).
    gates_x = (jnp.dot(emb_buf[...], wih_ref[...],
                       preferred_element_type=jnp.float32) + b_ref[...])

    # ---- Hoisted loop invariants (gate_math is traced T+1 times).
    whh = whh_ref[...]
    lane = lax.broadcasted_iota(jnp.int32, (1, 4 * H), 1)
    is_g = (lane >= 2 * H) & (lane < 3 * H)
    gate_scale = jnp.where(is_g, 1.0, 0.5).astype(jnp.float32)  # [.5,.5,1,.5]/block
    gate_shift = jnp.where(is_g, 0.0, 0.5).astype(jnp.float32)  # [.5,.5,0,.5]/block

    def gate_math(z, c_prev=None):
        # One full-width EUP tanh pass: sigmoid(x) = 0.5*tanh(x/2)+0.5 on the
        # i/f/o lane blocks, plain tanh on the g block, recovered with a single
        # lane-constant affine.
        t = jnp.tanh(z * gate_scale)
        gates = t * gate_scale + gate_shift
        i = gates[:, 0 * H:1 * H]
        f = gates[:, 1 * H:2 * H]
        g = gates[:, 2 * H:3 * H]
        o = gates[:, 3 * H:4 * H]
        c_new = i * g if c_prev is None else f * c_prev + i * g
        return o * jnp.tanh(c_new), c_new

    # ---- Backward direction.  CONTRACT: output[:, -1, H:] is the reverse
    # LSTM's FIRST step from a ZERO initial state, so h_prev @ whh_b == 0 and a
    # single gate evaluation on the precomputed projection is exact.  This
    # breaks if a nonzero h0/c0 or full-sequence outputs are ever needed.
    # Evaluated before the forward loop so its EUP latency hides under it.
    h_bwd, _ = gate_math(gates_x[(T - 1) * BP:T * BP, 4 * H:8 * H])

    # ---- Forward recurrence, fully unrolled (T small/static); every slice is
    # (8,128)-tile aligned.  Step 0 skips h @ whh (h0 == 0).
    h, c = gate_math(gates_x[0:BP, 0:4 * H])
    for t in range(1, T):
        z = (gates_x[t * BP:(t + 1) * BP, 0:4 * H]
             + jnp.dot(h, whh, preferred_element_type=jnp.float32))
        h, c = gate_math(z, c)

    # ---- Linear head, split per direction (no lane-concat to a sub-128 width).
    logits = (jnp.dot(h, wlin_f_ref[...], preferred_element_type=jnp.float32)
              + jnp.dot(h_bwd, wlin_b_ref[...], preferred_element_type=jnp.float32)
              + blin_ref[...])
    out_ref[...] = logits[0:B, :]


def pack_params(params):
    """One-time packing into the kernel layout (hoisted out of the call path)."""
    H = params["whh_f"].shape[0]
    return dict(
        embedding=params["embedding"].astype(jnp.float32),
        wih_cat=jnp.concatenate([params["wih_f"], params["wih_b"]], axis=1),  # (D, 8H)
        b_cat=jnp.concatenate([params["b_f"], params["b_b"]], axis=1),        # (1, 8H)
        whh_f=params["whh_f"],                                                # (H, 4H)
        wlin_f=params["wlin"][:H],                                            # (H, P)
        wlin_b=params["wlin"][H:],                                            # (H, P)
        blin=params["blin"],                                                  # (1, P)
    )


def disambiguation_lstm_forward(x_idx, packed):
    """x_idx: (B, T) int32 word ids.  Returns (B, n_pronounce) float32.

    Single Pallas call: embedding gather, both directions' projections, the
    forward recurrence and the linear head all run in-kernel.  Arrays are tiny
    (<100 KiB total), so full-array VMEM specs and no grid (latency-bound; any
    tiling would only add per-step pipeline overhead).
    """
    B, T = x_idx.shape
    D = packed["embedding"].shape[1]
    P = packed["blin"].shape[1]
    BP = _round_up(B, 8)                   # pad batch rows to sublane tiles

    vmem = pl.BlockSpec(memory_space=pltpu.MemorySpace.VMEM)
    smem = pl.BlockSpec(memory_space=pltpu.MemorySpace.SMEM)
    return pl.pallas_call(
        _bilstm_head_kernel,
        out_shape=jax.ShapeDtypeStruct((B, P), jnp.float32),
        in_specs=[smem] + [vmem] * 7,
        out_specs=vmem,
        scratch_shapes=[pltpu.VMEM((T * BP, D), jnp.float32)],
    )(x_idx, packed["embedding"], packed["wih_cat"], packed["b_cat"],
      packed["whh_f"], packed["wlin_f"], packed["wlin_b"], packed["blin"])


def reference_forward(x_idx, params):
    """Pure-JAX reference of the full PyTorch forward (full bi-LSTM + slice)."""
    emb = jnp.take(params["embedding"], x_idx, axis=0)
    emb_tm = jnp.transpose(emb, (1, 0, 2)).astype(jnp.float32)   # (T, B, D)
    B = x_idx.shape[0]
    H = params["whh_f"].shape[0]

    def make_step(wih, whh, b):
        def step(carry, x_t):
            h, c = carry
            gates = x_t @ wih + h @ whh + b
            i = jax.nn.sigmoid(gates[:, :H])
            f = jax.nn.sigmoid(gates[:, H:2 * H])
            g = jnp.tanh(gates[:, 2 * H:3 * H])
            o = jax.nn.sigmoid(gates[:, 3 * H:])
            c = f * c + i * g
            h = o * jnp.tanh(c)
            return (h, c), h
        return step

    init = (jnp.zeros((B, H), jnp.float32), jnp.zeros((B, H), jnp.float32))
    _, hs_f = lax.scan(make_step(params["wih_f"], params["whh_f"],
                                 params["b_f"]), init, emb_tm)
    _, hs_b = lax.scan(make_step(params["wih_b"], params["whh_b"],
                                 params["b_b"]), init, emb_tm[::-1])
    # output[:, -1, :] = [forward h at T-1, backward h at T-1 (first rev step)]
    feat = jnp.concatenate([hs_f[-1], hs_b[0]], axis=-1)
    return feat @ params["wlin"] + params["blin"]


def init_params(key, n_word, word_dim, word_hidden, n_pronounce):
    H = word_hidden
    s = 1.0 / (H ** 0.5)
    s_lin = 1.0 / ((2 * H) ** 0.5)
    ks = jax.random.split(key, 11)

    def u(k, shape, scale):
        return jax.random.uniform(k, shape, jnp.float32, -scale, scale)

    return dict(
        embedding=jax.random.normal(ks[0], (n_word, word_dim), jnp.float32),
        # forward direction (weights already transposed to (in, 4H))
        wih_f=u(ks[1], (word_dim, 4 * H), s),
        whh_f=u(ks[2], (H, 4 * H), s),
        b_f=u(ks[3], (1, 4 * H), s) + u(ks[4], (1, 4 * H), s),   # b_ih + b_hh
        # reverse direction
        wih_b=u(ks[5], (word_dim, 4 * H), s),
        whh_b=u(ks[6], (H, 4 * H), s),
        b_b=u(ks[7], (1, 4 * H), s) + u(ks[8], (1, 4 * H), s),
        # linear head
        wlin=u(ks[9], (2 * H, n_pronounce), s_lin),
        blin=u(ks[10], (1, n_pronounce), s_lin),
    )


if __name__ == "__main__":
    n_word, word_dim, word_hidden, n_pronounce = 50, 16, 32, 5
    B, T = 2, 8

    key = jax.random.PRNGKey(0)
    k_x, k_p = jax.random.split(key)
    x = jax.random.randint(k_x, (B, T), 0, n_word, dtype=jnp.int32)
    params = init_params(k_p, n_word, word_dim, word_hidden, n_pronounce)

    packed = pack_params(params)          # one-time packing, outside the jit
    fwd = jax.jit(disambiguation_lstm_forward)
    out = jax.block_until_ready(fwd(x, packed))

    ref = reference_forward(x, params)
    assert out.shape == (B, n_pronounce), out.shape
    # tanh-form sigmoid vs jax.nn.sigmoid differs only at the f32 rounding level
    assert jnp.allclose(out, ref, atol=1e-4, rtol=1e-4), (out, ref)
    print("KERNEL_OK")
</pallas_src>

<mosaic_0001>
module attributes {stable_mosaic.version = 11 : i64} {
  func.func @_bilstm_head_kernel(%arg0: memref<2x8xi32, #tpu.memory_space<smem>>, %arg1: memref<50x16xf32, #tpu.memory_space<vmem>>, %arg2: memref<16x256xf32, #tpu.memory_space<vmem>>, %arg3: memref<1x256xf32, #tpu.memory_space<vmem>>, %arg4: memref<32x128xf32, #tpu.memory_space<vmem>>, %arg5: memref<32x5xf32, #tpu.memory_space<vmem>>, %arg6: memref<32x5xf32, #tpu.memory_space<vmem>>, %arg7: memref<1x5xf32, #tpu.memory_space<vmem>>, %arg8: memref<2x5xf32, #tpu.memory_space<vmem>>, %arg9: memref<64x16xf32, #tpu.memory_space<vmem>>) attributes {dimension_semantics = [], scalar_prefetch = 0 : i64, scratch_operands = 1 : i64, tpu.core_type = #tpu.core_type<tc>} {
    %cst = arith.constant 0.000000e+00 : f32
    %0 = vector.broadcast %cst : f32 to vector<64x16xf32>
    %c0 = arith.constant 0 : index
    %c0_0 = arith.constant 0 : index
    %1 = vector.load %arg9[%c0, %c0_0] : memref<64x16xf32, #tpu.memory_space<vmem>>, vector<64x16xf32>
    tpu.vector_store %arg9[%c0, %c0_0], %0 {strides = array<i32>} : memref<64x16xf32, #tpu.memory_space<vmem>>, vector<64x16xf32>,
    %c0_1 = arith.constant 0 : index
    %c0_2 = arith.constant 0 : index
    %2 = memref.load %arg0[%c0_1, %c0_2] : memref<2x8xi32, #tpu.memory_space<smem>>
    %3 = arith.index_cast %2 : i32 to index
    %c0_3 = arith.constant 0 : index
    %4 = vector.load %arg1[%3, %c0_3] : memref<50x16xf32, #tpu.memory_space<vmem>>, vector<1x16xf32>
    %c0_4 = arith.constant 0 : index
    %c0_5 = arith.constant 0 : index
    %5 = vector.load %arg9[%c0_4, %c0_5] : memref<64x16xf32, #tpu.memory_space<vmem>>, vector<1x16xf32>
    tpu.vector_store %arg9[%c0_4, %c0_5], %4 {strides = array<i32>} : memref<64x16xf32, #tpu.memory_space<vmem>>, vector<1x16xf32>,
    %c1 = arith.constant 1 : index
    %c0_6 = arith.constant 0 : index
    %6 = memref.load %arg0[%c1, %c0_6] : memref<2x8xi32, #tpu.memory_space<smem>>
    %7 = arith.index_cast %6 : i32 to index
    %c0_7 = arith.constant 0 : index
    %8 = vector.load %arg1[%7, %c0_7] : memref<50x16xf32, #tpu.memory_space<vmem>>, vector<1x16xf32>
    %c1_8 = arith.constant 1 : index
    %c0_9 = arith.constant 0 : index
    %9 = vector.load %arg9[%c1_8, %c0_9] : memref<64x16xf32, #tpu.memory_space<vmem>>, vector<1x16xf32>
    tpu.vector_store %arg9[%c1_8, %c0_9], %8 {strides = array<i32>} : memref<64x16xf32, #tpu.memory_space<vmem>>, vector<1x16xf32>,
    %c0_10 = arith.constant 0 : index
    %c1_11 = arith.constant 1 : index
    %10 = memref.load %arg0[%c0_10, %c1_11] : memref<2x8xi32, #tpu.memory_space<smem>>
    %11 = arith.index_cast %10 : i32 to index
    %c0_12 = arith.constant 0 : index
    %12 = vector.load %arg1[%11, %c0_12] : memref<50x16xf32, #tpu.memory_space<vmem>>, vector<1x16xf32>
    %c8 = arith.constant 8 : index
    %c0_13 = arith.constant 0 : index
    %13 = vector.load %arg9[%c8, %c0_13] : memref<64x16xf32, #tpu.memory_space<vmem>>, vector<1x16xf32>
    tpu.vector_store %arg9[%c8, %c0_13], %12 {strides = array<i32>} : memref<64x16xf32, #tpu.memory_space<vmem>>, vector<1x16xf32>,
    %c1_14 = arith.constant 1 : index
    %c1_15 = arith.constant 1 : index
    %14 = memref.load %arg0[%c1_14, %c1_15] : memref<2x8xi32, #tpu.memory_space<smem>>
    %15 = arith.index_cast %14 : i32 to index
    %c0_16 = arith.constant 0 : index
    %16 = vector.load %arg1[%15, %c0_16] : memref<50x16xf32, #tpu.memory_space<vmem>>, vector<1x16xf32>
    %c9 = arith.constant 9 : index
    %c0_17 = arith.constant 0 : index
    %17 = vector.load %arg9[%c9, %c0_17] : memref<64x16xf32, #tpu.memory_space<vmem>>, vector<1x16xf32>
    tpu.vector_store %arg9[%c9, %c0_17], %16 {strides = array<i32>} : memref<64x16xf32, #tpu.memory_space<vmem>>, vector<1x16xf32>,
    %c0_18 = arith.constant 0 : index
    %c2 = arith.constant 2 : index
    %18 = memref.load %arg0[%c0_18, %c2] : memref<2x8xi32, #tpu.memory_space<smem>>
    %19 = arith.index_cast %18 : i32 to index
    %c0_19 = arith.constant 0 : index
    %20 = vector.load %arg1[%19, %c0_19] : memref<50x16xf32, #tpu.memory_space<vmem>>, vector<1x16xf32>
    %c16 = arith.constant 16 : index
    %c0_20 = arith.constant 0 : index
    %21 = vector.load %arg9[%c16, %c0_20] : memref<64x16xf32, #tpu.memory_space<vmem>>, vector<1x16xf32>
    tpu.vector_store %arg9[%c16, %c0_20], %20 {strides = array<i32>} : memref<64x16xf32, #tpu.memory_space<vmem>>, vector<1x16xf32>,
    %c1_21 = arith.constant 1 : index
    %c2_22 = arith.constant 2 : index
    %22 = memref.load %arg0[%c1_21, %c2_22] : memref<2x8xi32, #tpu.memory_space<smem>>
    %23 = arith.index_cast %22 : i32 to index
    %c0_23 = arith.constant 0 : index
    %24 = vector.load %arg1[%23, %c0_23] : memref<50x16xf32, #tpu.memory_space<vmem>>, vector<1x16xf32>
    %c17 = arith.constant 17 : index
    %c0_24 = arith.constant 0 : index
    %25 = vector.load %arg9[%c17, %c0_24] : memref<64x16xf32, #tpu.memory_space<vmem>>, vector<1x16xf32>
    tpu.vector_store %arg9[%c17, %c0_24], %24 {strides = array<i32>} : memref<64x16xf32, #tpu.memory_space<vmem>>, vector<1x16xf32>,
    %c0_25 = arith.constant 0 : index
    %c3 = arith.constant 3 : index
    %26 = memref.load %arg0[%c0_25, %c3] : memref<2x8xi32, #tpu.memory_space<smem>>
    %27 = arith.index_cast %26 : i32 to index
    %c0_26 = arith.constant 0 : index
    %28 = vector.load %arg1[%27, %c0_26] : memref<50x16xf32, #tpu.memory_space<vmem>>, vector<1x16xf32>
    %c24 = arith.constant 24 : index
    %c0_27 = arith.constant 0 : index
    %29 = vector.load %arg9[%c24, %c0_27] : memref<64x16xf32, #tpu.memory_space<vmem>>, vector<1x16xf32>
    tpu.vector_store %arg9[%c24, %c0_27], %28 {strides = array<i32>} : memref<64x16xf32, #tpu.memory_space<vmem>>, vector<1x16xf32>,
    %c1_28 = arith.constant 1 : index
    %c3_29 = arith.constant 3 : index
    %30 = memref.load %arg0[%c1_28, %c3_29] : memref<2x8xi32, #tpu.memory_space<smem>>
    %31 = arith.index_cast %30 : i32 to index
    %c0_30 = arith.constant 0 : index
    %32 = vector.load %arg1[%31, %c0_30] : memref<50x16xf32, #tpu.memory_space<vmem>>, vector<1x16xf32>
    %c25 = arith.constant 25 : index
    %c0_31 = arith.constant 0 : index
    %33 = vector.load %arg9[%c25, %c0_31] : memref<64x16xf32, #tpu.memory_space<vmem>>, vector<1x16xf32>
    tpu.vector_store %arg9[%c25, %c0_31], %32 {strides = array<i32>} : memref<64x16xf32, #tpu.memory_space<vmem>>, vector<1x16xf32>,
    %c0_32 = arith.constant 0 : index
    %c4 = arith.constant 4 : index
    %34 = memref.load %arg0[%c0_32, %c4] : memref<2x8xi32, #tpu.memory_space<smem>>
    %35 = arith.index_cast %34 : i32 to index
    %c0_33 = arith.constant 0 : index
    %36 = vector.load %arg1[%35, %c0_33] : memref<50x16xf32, #tpu.memory_space<vmem>>, vector<1x16xf32>
    %c32 = arith.constant 32 : index
    %c0_34 = arith.constant 0 : index
    %37 = vector.load %arg9[%c32, %c0_34] : memref<64x16xf32, #tpu.memory_space<vmem>>, vector<1x16xf32>
    tpu.vector_store %arg9[%c32, %c0_34], %36 {strides = array<i32>} : memref<64x16xf32, #tpu.memory_space<vmem>>, vector<1x16xf32>,
    %c1_35 = arith.constant 1 : index
    %c4_36 = arith.constant 4 : index
    %38 = memref.load %arg0[%c1_35, %c4_36] : memref<2x8xi32, #tpu.memory_space<smem>>
    %39 = arith.index_cast %38 : i32 to index
    %c0_37 = arith.constant 0 : index
    %40 = vector.load %arg1[%39, %c0_37] : memref<50x16xf32, #tpu.memory_space<vmem>>, vector<1x16xf32>
    %c33 = arith.constant 33 : index
    %c0_38 = arith.constant 0 : index
    %41 = vector.load %arg9[%c33, %c0_38] : memref<64x16xf32, #tpu.memory_space<vmem>>, vector<1x16xf32>
    tpu.vector_store %arg9[%c33, %c0_38], %40 {strides = array<i32>} : memref<64x16xf32, #tpu.memory_space<vmem>>, vector<1x16xf32>,
    %c0_39 = arith.constant 0 : index
    %c5 = arith.constant 5 : index
    %42 = memref.load %arg0[%c0_39, %c5] : memref<2x8xi32, #tpu.memory_space<smem>>
    %43 = arith.index_cast %42 : i32 to index
    %c0_40 = arith.constant 0 : index
    %44 = vector.load %arg1[%43, %c0_40] : memref<50x16xf32, #tpu.memory_space<vmem>>, vector<1x16xf32>
    %c40 = arith.constant 40 : index
    %c0_41 = arith.constant 0 : index
    %45 = vector.load %arg9[%c40, %c0_41] : memref<64x16xf32, #tpu.memory_space<vmem>>, vector<1x16xf32>
    tpu.vector_store %arg9[%c40, %c0_41], %44 {strides = array<i32>} : memref<64x16xf32, #tpu.memory_space<vmem>>, vector<1x16xf32>,
    %c1_42 = arith.constant 1 : index
    %c5_43 = arith.constant 5 : index
    %46 = memref.load %arg0[%c1_42, %c5_43] : memref<2x8xi32, #tpu.memory_space<smem>>
    %47 = arith.index_cast %46 : i32 to index
    %c0_44 = arith.constant 0 : index
    %48 = vector.load %arg1[%47, %c0_44] : memref<50x16xf32, #tpu.memory_space<vmem>>, vector<1x16xf32>
    %c41 = arith.constant 41 : index
    %c0_45 = arith.constant 0 : index
    %49 = vector.load %arg9[%c41, %c0_45] : memref<64x16xf32, #tpu.memory_space<vmem>>, vector<1x16xf32>
    tpu.vector_store %arg9[%c41, %c0_45], %48 {strides = array<i32>} : memref<64x16xf32, #tpu.memory_space<vmem>>, vector<1x16xf32>,
    %c0_46 = arith.constant 0 : index
    %c6 = arith.constant 6 : index
    %50 = memref.load %arg0[%c0_46, %c6] : memref<2x8xi32, #tpu.memory_space<smem>>
    %51 = arith.index_cast %50 : i32 to index
    %c0_47 = arith.constant 0 : index
    %52 = vector.load %arg1[%51, %c0_47] : memref<50x16xf32, #tpu.memory_space<vmem>>, vector<1x16xf32>
    %c48 = arith.constant 48 : index
    %c0_48 = arith.constant 0 : index
    %53 = vector.load %arg9[%c48, %c0_48] : memref<64x16xf32, #tpu.memory_space<vmem>>, vector<1x16xf32>
    tpu.vector_store %arg9[%c48, %c0_48], %52 {strides = array<i32>} : memref<64x16xf32, #tpu.memory_space<vmem>>, vector<1x16xf32>,
    %c1_49 = arith.constant 1 : index
    %c6_50 = arith.constant 6 : index
    %54 = memref.load %arg0[%c1_49, %c6_50] : memref<2x8xi32, #tpu.memory_space<smem>>
    %55 = arith.index_cast %54 : i32 to index
    %c0_51 = arith.constant 0 : index
    %56 = vector.load %arg1[%55, %c0_51] : memref<50x16xf32, #tpu.memory_space<vmem>>, vector<1x16xf32>
    %c49 = arith.constant 49 : index
    %c0_52 = arith.constant 0 : index
    %57 = vector.load %arg9[%c49, %c0_52] : memref<64x16xf32, #tpu.memory_space<vmem>>, vector<1x16xf32>
    tpu.vector_store %arg9[%c49, %c0_52], %56 {strides = array<i32>} : memref<64x16xf32, #tpu.memory_space<vmem>>, vector<1x16xf32>,
    %c0_53 = arith.constant 0 : index
    %c7 = arith.constant 7 : index
    %58 = memref.load %arg0[%c0_53, %c7] : memref<2x8xi32, #tpu.memory_space<smem>>
    %59 = arith.index_cast %58 : i32 to index
    %c0_54 = arith.constant 0 : index
    %60 = vector.load %arg1[%59, %c0_54] : memref<50x16xf32, #tpu.memory_space<vmem>>, vector<1x16xf32>
    %c56 = arith.constant 56 : index
    %c0_55 = arith.constant 0 : index
    %61 = vector.load %arg9[%c56, %c0_55] : memref<64x16xf32, #tpu.memory_space<vmem>>, vector<1x16xf32>
    tpu.vector_store %arg9[%c56, %c0_55], %60 {strides = array<i32>} : memref<64x16xf32, #tpu.memory_space<vmem>>, vector<1x16xf32>,
    %c1_56 = arith.constant 1 : index
    %c7_57 = arith.constant 7 : index
    %62 = memref.load %arg0[%c1_56, %c7_57] : memref<2x8xi32, #tpu.memory_space<smem>>
    %63 = arith.index_cast %62 : i32 to index
    %c0_58 = arith.constant 0 : index
    %64 = vector.load %arg1[%63, %c0_58] : memref<50x16xf32, #tpu.memory_space<vmem>>, vector<1x16xf32>
    %c57 = arith.constant 57 : index
    %c0_59 = arith.constant 0 : index
    %65 = vector.load %arg9[%c57, %c0_59] : memref<64x16xf32, #tpu.memory_space<vmem>>, vector<1x16xf32>
    tpu.vector_store %arg9[%c57, %c0_59], %64 {strides = array<i32>} : memref<64x16xf32, #tpu.memory_space<vmem>>, vector<1x16xf32>,
    %c0_60 = arith.constant 0 : index
    %c0_61 = arith.constant 0 : index
    %66 = vector.load %arg9[%c0_60, %c0_61] : memref<64x16xf32, #tpu.memory_space<vmem>>, vector<64x16xf32>
    %c0_62 = arith.constant 0 : index
    %c0_63 = arith.constant 0 : index
    %67 = vector.load %arg2[%c0_62, %c0_63] : memref<16x256xf32, #tpu.memory_space<vmem>>, vector<16x256xf32>
    %cst_64 = arith.constant dense<0.000000e+00> : vector<64x256xf32>
    %68 = tpu.matmul %66, %67, %cst_64 {dimension_numbers = #tpu.dot_dimension_numbers<[1], [0], [0], [1], [0, 0, 1, 1], [], []>} : vector<64x16xf32>, vector<16x256xf32>, vector<64x256xf32> -> vector<64x256xf32>
    %c0_65 = arith.constant 0 : index
    %c0_66 = arith.constant 0 : index
    %69 = vector.load %arg3[%c0_65, %c0_66] : memref<1x256xf32, #tpu.memory_space<vmem>>, vector<1x256xf32>
    %70 = vector.broadcast %69 : vector<1x256xf32> to vector<64x256xf32>
    %71 = arith.addf %68, %70 : vector<64x256xf32>
    %c0_67 = arith.constant 0 : index
    %c0_68 = arith.constant 0 : index
    %72 = vector.load %arg4[%c0_67, %c0_68] : memref<32x128xf32, #tpu.memory_space<vmem>>, vector<32x128xf32>
    %73 = tpu.iota {dimensions = array<i32: 1>} : vector<1x128xi32>
    %c64_i32 = arith.constant 64 : i32
    %74 = vector.broadcast %c64_i32 : i32 to vector<1x128xi32>
    %75 = arith.cmpi sge, %73, %74 : vector<1x128xi32>
    %c96_i32 = arith.constant 96 : i32
    %76 = vector.broadcast %c96_i32 : i32 to vector<1x128xi32>
    %77 = arith.cmpi slt, %73, %76 : vector<1x128xi32>
    %78 = arith.andi %75, %77 : vector<1x128xi1>
    %cst_69 = arith.constant 1.000000e+00 : f32
    %cst_70 = arith.constant 5.000000e-01 : f32
    %79 = vector.broadcast %cst_69 : f32 to vector<1x128xf32>
    %80 = vector.broadcast %cst_70 : f32 to vector<1x128xf32>
    %81 = arith.select %78, %79, %80 : vector<1x128xi1>, vector<1x128xf32>
    %cst_71 = arith.constant 0.000000e+00 : f32
    %cst_72 = arith.constant 5.000000e-01 : f32
    %82 = vector.broadcast %cst_71 : f32 to vector<1x128xf32>
    %83 = vector.broadcast %cst_72 : f32 to vector<1x128xf32>
    %84 = arith.select %78, %82, %83 : vector<1x128xi1>, vector<1x128xf32>
    %85 = vector.extract_strided_slice %71 {offsets = [56, 128], sizes = [8, 128], strides = [1, 1]} : vector<64x256xf32> to vector<8x128xf32>
    %86 = vector.broadcast %81 : vector<1x128xf32> to vector<8x128xf32>
    %87 = arith.mulf %85, %86 : vector<8x128xf32>
    %88 = math.tanh %87 : vector<8x128xf32>
    %89 = vector.broadcast %81 : vector<1x128xf32> to vector<8x128xf32>
    %90 = arith.mulf %88, %89 : vector<8x128xf32>
    %91 = vector.broadcast %84 : vector<1x128xf32> to vector<8x128xf32>
    %92 = arith.addf %90, %91 : vector<8x128xf32>
    %93 = vector.extract_strided_slice %92 {offsets = [0, 0], sizes = [8, 32], strides = [1, 1]} : vector<8x128xf32> to vector<8x32xf32>
    %94 = vector.extract_strided_slice %92 {offsets = [0, 64], sizes = [8, 32], strides = [1, 1]} : vector<8x128xf32> to vector<8x32xf32>
    %95 = vector.extract_strided_slice %92 {offsets = [0, 96], sizes = [8, 32], strides = [1, 1]} : vector<8x128xf32> to vector<8x32xf32>
    %96 = arith.mulf %93, %94 : vector<8x32xf32>
    %97 = math.tanh %96 : vector<8x32xf32>
    %98 = arith.mulf %95, %97 : vector<8x32xf32>
    %99 = vector.extract_strided_slice %71 {offsets = [0, 0], sizes = [8, 128], strides = [1, 1]} : vector<64x256xf32> to vector<8x128xf32>
    %100 = vector.broadcast %81 : vector<1x128xf32> to vector<8x128xf32>
    %101 = arith.mulf %99, %100 : vector<8x128xf32>
    %102 = math.tanh %101 : vector<8x128xf32>
    %103 = vector.broadcast %81 : vector<1x128xf32> to vector<8x128xf32>
    %104 = arith.mulf %102, %103 : vector<8x128xf32>
    %105 = vector.broadcast %84 : vector<1x128xf32> to vector<8x128xf32>
    %106 = arith.addf %104, %105 : vector<8x128xf32>
    %107 = vector.extract_strided_slice %106 {offsets = [0, 0], sizes = [8, 32], strides = [1, 1]} : vector<8x128xf32> to vector<8x32xf32>
    %108 = vector.extract_strided_slice %106 {offsets = [0, 64], sizes = [8, 32], strides = [1, 1]} : vector<8x128xf32> to vector<8x32xf32>
    %109 = vector.extract_strided_slice %106 {offsets = [0, 96], sizes = [8, 32], strides = [1, 1]} : vector<8x128xf32> to vector<8x32xf32>
    %110 = arith.mulf %107, %108 : vector<8x32xf32>
    %111 = math.tanh %110 : vector<8x32xf32>
    %112 = arith.mulf %109, %111 : vector<8x32xf32>
    %113 = vector.extract_strided_slice %71 {offsets = [8, 0], sizes = [8, 128], strides = [1, 1]} : vector<64x256xf32> to vector<8x128xf32>
    %cst_73 = arith.constant dense<0.000000e+00> : vector<8x128xf32>
    %114 = tpu.matmul %112, %72, %cst_73 {dimension_numbers = #tpu.dot_dimension_numbers<[1], [0], [0], [1], [0, 0, 1, 1], [], []>} : vector<8x32xf32>, vector<32x128xf32>, vector<8x128xf32> -> vector<8x128xf32>
    %115 = arith.addf %113, %114 : vector<8x128xf32>
    %116 = vector.broadcast %81 : vector<1x128xf32> to vector<8x128xf32>
    %117 = arith.mulf %115, %116 : vector<8x128xf32>
    %118 = math.tanh %117 : vector<8x128xf32>
    %119 = vector.broadcast %81 : vector<1x128xf32> to vector<8x128xf32>
    %120 = arith.mulf %118, %119 : vector<8x128xf32>
    %121 = vector.broadcast %84 : vector<1x128xf32> to vector<8x128xf32>
    %122 = arith.addf %120, %121 : vector<8x128xf32>
    %123 = vector.extract_strided_slice %122 {offsets = [0, 0], sizes = [8, 32], strides = [1, 1]} : vector<8x128xf32> to vector<8x32xf32>
    %124 = vector.extract_strided_slice %122 {offsets = [0, 32], sizes = [8, 32], strides = [1, 1]} : vector<8x128xf32> to vector<8x32xf32>
    %125 = vector.extract_strided_slice %122 {offsets = [0, 64], sizes = [8, 32], strides = [1, 1]} : vector<8x128xf32> to vector<8x32xf32>
    %126 = vector.extract_strided_slice %122 {offsets = [0, 96], sizes = [8, 32], strides = [1, 1]} : vector<8x128xf32> to vector<8x32xf32>
    %127 = arith.mulf %124, %110 : vector<8x32xf32>
    %128 = arith.mulf %123, %125 : vector<8x32xf32>
    %129 = arith.addf %127, %128 : vector<8x32xf32>
    %130 = math.tanh %129 : vector<8x32xf32>
    %131 = arith.mulf %126, %130 : vector<8x32xf32>
    %132 = vector.extract_strided_slice %71 {offsets = [16, 0], sizes = [8, 128], strides = [1, 1]} : vector<64x256xf32> to vector<8x128xf32>
    %cst_74 = arith.constant dense<0.000000e+00> : vector<8x128xf32>
    %133 = tpu.matmul %131, %72, %cst_74 {dimension_numbers = #tpu.dot_dimension_numbers<[1], [0], [0], [1], [0, 0, 1, 1], [], []>} : vector<8x32xf32>, vector<32x128xf32>, vector<8x128xf32> -> vector<8x128xf32>
    %134 = arith.addf %132, %133 : vector<8x128xf32>
    %135 = vector.broadcast %81 : vector<1x128xf32> to vector<8x128xf32>
    %136 = arith.mulf %134, %135 : vector<8x128xf32>
    %137 = math.tanh %136 : vector<8x128xf32>
    %138 = vector.broadcast %81 : vector<1x128xf32> to vector<8x128xf32>
    %139 = arith.mulf %137, %138 : vector<8x128xf32>
    %140 = vector.broadcast %84 : vector<1x128xf32> to vector<8x128xf32>
    %141 = arith.addf %139, %140 : vector<8x128xf32>
    %142 = vector.extract_strided_slice %141 {offsets = [0, 0], sizes = [8, 32], strides = [1, 1]} : vector<8x128xf32> to vector<8x32xf32>
    %143 = vector.extract_strided_slice %141 {offsets = [0, 32], sizes = [8, 32], strides = [1, 1]} : vector<8x128xf32> to vector<8x32xf32>
    %144 = vector.extract_strided_slice %141 {offsets = [0, 64], sizes = [8, 32], strides = [1, 1]} : vector<8x128xf32> to vector<8x32xf32>
    %145 = vector.extract_strided_slice %141 {offsets = [0, 96], sizes = [8, 32], strides = [1, 1]} : vector<8x128xf32> to vector<8x32xf32>
    %146 = arith.mulf %143, %129 : vector<8x32xf32>
    %147 = arith.mulf %142, %144 : vector<8x32xf32>
    %148 = arith.addf %146, %147 : vector<8x32xf32>
    %149 = math.tanh %148 : vector<8x32xf32>
    %150 = arith.mulf %145, %149 : vector<8x32xf32>
    %151 = vector.extract_strided_slice %71 {offsets = [24, 0], sizes = [8, 128], strides = [1, 1]} : vector<64x256xf32> to vector<8x128xf32>
    %cst_75 = arith.constant dense<0.000000e+00> : vector<8x128xf32>
    %152 = tpu.matmul %150, %72, %cst_75 {dimension_numbers = #tpu.dot_dimension_numbers<[1], [0], [0], [1], [0, 0, 1, 1], [], []>} : vector<8x32xf32>, vector<32x128xf32>, vector<8x128xf32> -> vector<8x128xf32>
    %153 = arith.addf %151, %152 : vector<8x128xf32>
    %154 = vector.broadcast %81 : vector<1x128xf32> to vector<8x128xf32>
    %155 = arith.mulf %153, %154 : vector<8x128xf32>
    %156 = math.tanh %155 : vector<8x128xf32>
    %157 = vector.broadcast %81 : vector<1x128xf32> to vector<8x128xf32>
    %158 = arith.mulf %156, %157 : vector<8x128xf32>
    %159 = vector.broadcast %84 : vector<1x128xf32> to vector<8x128xf32>
    %160 = arith.addf %158, %159 : vector<8x128xf32>
    %161 = vector.extract_strided_slice %160 {offsets = [0, 0], sizes = [8, 32], strides = [1, 1]} : vector<8x128xf32> to vector<8x32xf32>
    %162 = vector.extract_strided_slice %160 {offsets = [0, 32], sizes = [8, 32], strides = [1, 1]} : vector<8x128xf32> to vector<8x32xf32>
    %163 = vector.extract_strided_slice %160 {offsets = [0, 64], sizes = [8, 32], strides = [1, 1]} : vector<8x128xf32> to vector<8x32xf32>
    %164 = vector.extract_strided_slice %160 {offsets = [0, 96], sizes = [8, 32], strides = [1, 1]} : vector<8x128xf32> to vector<8x32xf32>
    %165 = arith.mulf %162, %148 : vector<8x32xf32>
    %166 = arith.mulf %161, %163 : vector<8x32xf32>
    %167 = arith.addf %165, %166 : vector<8x32xf32>
    %168 = math.tanh %167 : vector<8x32xf32>
    %169 = arith.mulf %164, %168 : vector<8x32xf32>
    %170 = vector.extract_strided_slice %71 {offsets = [32, 0], sizes = [8, 128], strides = [1, 1]} : vector<64x256xf32> to vector<8x128xf32>
    %cst_76 = arith.constant dense<0.000000e+00> : vector<8x128xf32>
    %171 = tpu.matmul %169, %72, %cst_76 {dimension_numbers = #tpu.dot_dimension_numbers<[1], [0], [0], [1], [0, 0, 1, 1], [], []>} : vector<8x32xf32>, vector<32x128xf32>, vector<8x128xf32> -> vector<8x128xf32>
    %172 = arith.addf %170, %171 : vector<8x128xf32>
    %173 = vector.broadcast %81 : vector<1x128xf32> to vector<8x128xf32>
    %174 = arith.mulf %172, %173 : vector<8x128xf32>
    %175 = math.tanh %174 : vector<8x128xf32>
    %176 = vector.broadcast %81 : vector<1x128xf32> to vector<8x128xf32>
    %177 = arith.mulf %175, %176 : vector<8x128xf32>
    %178 = vector.broadcast %84 : vector<1x128xf32> to vector<8x128xf32>
    %179 = arith.addf %177, %178 : vector<8x128xf32>
    %180 = vector.extract_strided_slice %179 {offsets = [0, 0], sizes = [8, 32], strides = [1, 1]} : vector<8x128xf32> to vector<8x32xf32>
    %181 = vector.extract_strided_slice %179 {offsets = [0, 32], sizes = [8, 32], strides = [1, 1]} : vector<8x128xf32> to vector<8x32xf32>
    %182 = vector.extract_strided_slice %179 {offsets = [0, 64], sizes = [8, 32], strides = [1, 1]} : vector<8x128xf32> to vector<8x32xf32>
    %183 = vector.extract_strided_slice %179 {offsets = [0, 96], sizes = [8, 32], strides = [1, 1]} : vector<8x128xf32> to vector<8x32xf32>
    %184 = arith.mulf %181, %167 : vector<8x32xf32>
    %185 = arith.mulf %180, %182 : vector<8x32xf32>
    %186 = arith.addf %184, %185 : vector<8x32xf32>
    %187 = math.tanh %186 : vector<8x32xf32>
    %188 = arith.mulf %183, %187 : vector<8x32xf32>
    %189 = vector.extract_strided_slice %71 {offsets = [40, 0], sizes = [8, 128], strides = [1, 1]} : vector<64x256xf32> to vector<8x128xf32>
    %cst_77 = arith.constant dense<0.000000e+00> : vector<8x128xf32>
    %190 = tpu.matmul %188, %72, %cst_77 {dimension_numbers = #tpu.dot_dimension_numbers<[1], [0], [0], [1], [0, 0, 1, 1], [], []>} : vector<8x32xf32>, vector<32x128xf32>, vector<8x128xf32> -> vector<8x128xf32>
    %191 = arith.addf %189, %190 : vector<8x128xf32>
    %192 = vector.broadcast %81 : vector<1x128xf32> to vector<8x128xf32>
    %193 = arith.mulf %191, %192 : vector<8x128xf32>
    %194 = math.tanh %193 : vector<8x128xf32>
    %195 = vector.broadcast %81 : vector<1x128xf32> to vector<8x128xf32>
    %196 = arith.mulf %194, %195 : vector<8x128xf32>
    %197 = vector.broadcast %84 : vector<1x128xf32> to vector<8x128xf32>
    %198 = arith.addf %196, %197 : vector<8x128xf32>
    %199 = vector.extract_strided_slice %198 {offsets = [0, 0], sizes = [8, 32], strides = [1, 1]} : vector<8x128xf32> to vector<8x32xf32>
    %200 = vector.extract_strided_slice %198 {offsets = [0, 32], sizes = [8, 32], strides = [1, 1]} : vector<8x128xf32> to vector<8x32xf32>
    %201 = vector.extract_strided_slice %198 {offsets = [0, 64], sizes = [8, 32], strides = [1, 1]} : vector<8x128xf32> to vector<8x32xf32>
    %202 = vector.extract_strided_slice %198 {offsets = [0, 96], sizes = [8, 32], strides = [1, 1]} : vector<8x128xf32> to vector<8x32xf32>
    %203 = arith.mulf %200, %186 : vector<8x32xf32>
    %204 = arith.mulf %199, %201 : vector<8x32xf32>
    %205 = arith.addf %203, %204 : vector<8x32xf32>
    %206 = math.tanh %205 : vector<8x32xf32>
    %207 = arith.mulf %202, %206 : vector<8x32xf32>
    %208 = vector.extract_strided_slice %71 {offsets = [48, 0], sizes = [8, 128], strides = [1, 1]} : vector<64x256xf32> to vector<8x128xf32>
    %cst_78 = arith.constant dense<0.000000e+00> : vector<8x128xf32>
    %209 = tpu.matmul %207, %72, %cst_78 {dimension_numbers = #tpu.dot_dimension_numbers<[1], [0], [0], [1], [0, 0, 1, 1], [], []>} : vector<8x32xf32>, vector<32x128xf32>, vector<8x128xf32> -> vector<8x128xf32>
    %210 = arith.addf %208, %209 : vector<8x128xf32>
    %211 = vector.broadcast %81 : vector<1x128xf32> to vector<8x128xf32>
    %212 = arith.mulf %210, %211 : vector<8x128xf32>
    %213 = math.tanh %212 : vector<8x128xf32>
    %214 = vector.broadcast %81 : vector<1x128xf32> to vector<8x128xf32>
    %215 = arith.mulf %213, %214 : vector<8x128xf32>
    %216 = vector.broadcast %84 : vector<1x128xf32> to vector<8x128xf32>
    %217 = arith.addf %215, %216 : vector<8x128xf32>
    %218 = vector.extract_strided_slice %217 {offsets = [0, 0], sizes = [8, 32], strides = [1, 1]} : vector<8x128xf32> to vector<8x32xf32>
    %219 = vector.extract_strided_slice %217 {offsets = [0, 32], sizes = [8, 32], strides = [1, 1]} : vector<8x128xf32> to vector<8x32xf32>
    %220 = vector.extract_strided_slice %217 {offsets = [0, 64], sizes = [8, 32], strides = [1, 1]} : vector<8x128xf32> to vector<8x32xf32>
    %221 = vector.extract_strided_slice %217 {offsets = [0, 96], sizes = [8, 32], strides = [1, 1]} : vector<8x128xf32> to vector<8x32xf32>
    %222 = arith.mulf %219, %205 : vector<8x32xf32>
    %223 = arith.mulf %218, %220 : vector<8x32xf32>
    %224 = arith.addf %222, %223 : vector<8x32xf32>
    %225 = math.tanh %224 : vector<8x32xf32>
    %226 = arith.mulf %221, %225 : vector<8x32xf32>
    %227 = vector.extract_strided_slice %71 {offsets = [56, 0], sizes = [8, 128], strides = [1, 1]} : vector<64x256xf32> to vector<8x128xf32>
    %cst_79 = arith.constant dense<0.000000e+00> : vector<8x128xf32>
    %228 = tpu.matmul %226, %72, %cst_79 {dimension_numbers = #tpu.dot_dimension_numbers<[1], [0], [0], [1], [0, 0, 1, 1], [], []>} : vector<8x32xf32>, vector<32x128xf32>, vector<8x128xf32> -> vector<8x128xf32>
    %229 = arith.addf %227, %228 : vector<8x128xf32>
    %230 = vector.broadcast %81 : vector<1x128xf32> to vector<8x128xf32>
    %231 = arith.mulf %229, %230 : vector<8x128xf32>
    %232 = math.tanh %231 : vector<8x128xf32>
    %233 = vector.broadcast %81 : vector<1x128xf32> to vector<8x128xf32>
    %234 = arith.mulf %232, %233 : vector<8x128xf32>
    %235 = vector.broadcast %84 : vector<1x128xf32> to vector<8x128xf32>
    %236 = arith.addf %234, %235 : vector<8x128xf32>
    %237 = vector.extract_strided_slice %236 {offsets = [0, 0], sizes = [8, 32], strides = [1, 1]} : vector<8x128xf32> to vector<8x32xf32>
    %238 = vector.extract_strided_slice %236 {offsets = [0, 32], sizes = [8, 32], strides = [1, 1]} : vector<8x128xf32> to vector<8x32xf32>
    %239 = vector.extract_strided_slice %236 {offsets = [0, 64], sizes = [8, 32], strides = [1, 1]} : vector<8x128xf32> to vector<8x32xf32>
    %240 = vector.extract_strided_slice %236 {offsets = [0, 96], sizes = [8, 32], strides = [1, 1]} : vector<8x128xf32> to vector<8x32xf32>
    %241 = arith.mulf %238, %224 : vector<8x32xf32>
    %242 = arith.mulf %237, %239 : vector<8x32xf32>
    %243 = arith.addf %241, %242 : vector<8x32xf32>
    %244 = math.tanh %243 : vector<8x32xf32>
    %245 = arith.mulf %240, %244 : vector<8x32xf32>
    %c0_80 = arith.constant 0 : index
    %c0_81 = arith.constant 0 : index
    %246 = vector.load %arg5[%c0_80, %c0_81] : memref<32x5xf32, #tpu.memory_space<vmem>>, vector<32x5xf32>
    %cst_82 = arith.constant dense<0.000000e+00> : vector<8x5xf32>
    %247 = tpu.matmul %245, %246, %cst_82 {dimension_numbers = #tpu.dot_dimension_numbers<[1], [0], [0], [1], [0, 0, 1, 1], [], []>} : vector<8x32xf32>, vector<32x5xf32>, vector<8x5xf32> -> vector<8x5xf32>
    %c0_83 = arith.constant 0 : index
    %c0_84 = arith.constant 0 : index
    %248 = vector.load %arg6[%c0_83, %c0_84] : memref<32x5xf32, #tpu.memory_space<vmem>>, vector<32x5xf32>
    %cst_85 = arith.constant dense<0.000000e+00> : vector<8x5xf32>
    %249 = tpu.matmul %98, %248, %cst_85 {dimension_numbers = #tpu.dot_dimension_numbers<[1], [0], [0], [1], [0, 0, 1, 1], [], []>} : vector<8x32xf32>, vector<32x5xf32>, vector<8x5xf32> -> vector<8x5xf32>
    %250 = arith.addf %247, %249 : vector<8x5xf32>
    %c0_86 = arith.constant 0 : index
    %c0_87 = arith.constant 0 : index
    %251 = vector.load %arg7[%c0_86, %c0_87] : memref<1x5xf32, #tpu.memory_space<vmem>>, vector<1x5xf32>
    %252 = vector.broadcast %251 : vector<1x5xf32> to vector<8x5xf32>
    %253 = arith.addf %250, %252 : vector<8x5xf32>
    %254 = vector.extract_strided_slice %253 {offsets = [0, 0], sizes = [2, 5], strides = [1, 1]} : vector<8x5xf32> to vector<2x5xf32>
    %c0_88 = arith.constant 0 : index
    %c0_89 = arith.constant 0 : index
    %255 = vector.load %arg8[%c0_88, %c0_89] : memref<2x5xf32, #tpu.memory_space<vmem>>, vector<2x5xf32>
    tpu.vector_store %arg8[%c0_88, %c0_89], %254 {strides = array<i32>} : memref<2x5xf32, #tpu.memory_space<vmem>>, vector<2x5xf32>,
    return
  }
}

</mosaic_0001>

<llo_original>
// kernel: disambiguation_lstm_forward.1
$region0: #{disambiguation_lstm_forward.1}
  #allocation0 [shape = 'u32[]', space=smem, size = 0x4, offset = 0x4, fixed_abs, tag = 'smem constant byte address 0x4 - core index']
  #allocation1 [shape = 'u32[144,128]{1,0:T(1,128)}', space=vmem, size = 0x12000, scoped, tag = 'internal scratch']
  #allocation2 [shape = 'f32[64,16]{1,0:T(8,128)}', space=vmem, size = 0x8000, scoped, tag = 'scratch operand']
  %s0 = inlined_call_operand.vmem [shape: s32[2,8], index: 0, kind: input, shape index: {}]
  %s1 = inlined_call_operand.vmem [shape: f32[50,16], index: 1, kind: input, shape index: {}]
  %s2 = inlined_call_operand.vmem [shape: f32[16,256], index: 2, kind: input, shape index: {}]
  %s3 = inlined_call_operand.vmem [shape: f32[1,256], index: 3, kind: input, shape index: {}]
  %s4 = inlined_call_operand.vmem [shape: f32[32,128], index: 4, kind: input, shape index: {}]
  %s5 = inlined_call_operand.vmem [shape: f32[32,5], index: 5, kind: input, shape index: {}]
  %s6 = inlined_call_operand.vmem [shape: f32[32,5], index: 6, kind: input, shape index: {}]
  %s7 = inlined_call_operand.vmem [shape: f32[1,5], index: 7, kind: input, shape index: {}]
  %s8 = inlined_call_operand.hbm [shape: f32[2,5], index: 8, kind: output, shape index: {}]
  %s9 = sld [smem:[#allocation0]]
  $region46: #{disambiguation_lstm_forward.1} parent=0
    _
  %s11 = ssub.s32 1, %s9
  %s12 = scalar_select 0, %s11, %s9
  $region1: #{disambiguation_lstm_forward.1} parent=0
    #allocation3 [shape = 'u8[1024]{0}', space=smem, size = 0x400, scoped, tag = 'input window, operand 0, single buffered']
    #allocation4 [shape = 's32[1]{0}', space=sflag, size = 0x4, scoped, tag = 'scoped memory for disambiguation_lstm_forward.1']
    #allocation5 [shape = 's32[1]{0}', space=sflag, size = 0x4, scoped, tag = 'scoped memory for disambiguation_lstm_forward.1']
    #allocation6 [shape = 'u8[1024]{0}', space=vmem, size = 0x400, scoped, tag = 'output window, operand 0, single buffered']
    %13 = vsyncpa [#allocation5], 0
    %14 = vsyncpa [#allocation4], 0
    // Predicated region
    $region2: #{disambiguation_lstm_forward.1} parent=1 // pred_check
      _
    $region3: #{disambiguation_lstm_forward.1} parent=1 // pred_check_branch
      %16 = sbr.rel (0) target = $region5
    $region4: #{disambiguation_lstm_forward.1} parent=1 // pred_region
      %s18 = ssub.s32 32, 32
      %19 = vsyncadd [#allocation5], %s18
      %s21 = sshll.u32 %s0, 4
      %s22 = int_to_ptr.vmem [resolvable:$true] %s21
      %24 = dma.vmem_to_smem %s22, 32, [#allocation3], [#allocation5]
    $region5: #{disambiguation_lstm_forward.1} parent=1 // pred_fallthru
      _
    // Predicated region
    $region6: #{disambiguation_lstm_forward.1} parent=1 // pred_check
      _
    $region7: #{disambiguation_lstm_forward.1} parent=1 // pred_check_branch
      %26 = sbr.rel (0) target = $region9
    $region8: #{disambiguation_lstm_forward.1} parent=1 // pred_region
      _
    $region9: #{disambiguation_lstm_forward.1} parent=1 // pred_fallthru
      _
    // Predicated region
    $region10: #{disambiguation_lstm_forward.1} parent=1 // pred_check
      _
    $region11: #{disambiguation_lstm_forward.1} parent=1 // pred_check_branch
      %28 = sbr.rel (0) target = $region13
    $region12: #{disambiguation_lstm_forward.1} parent=1 // pred_region
      _
    $region13: #{disambiguation_lstm_forward.1} parent=1 // pred_fallthru
      _
    // Predicated region
    $region14: #{disambiguation_lstm_forward.1} parent=1 // pred_check
      _
    $region15: #{disambiguation_lstm_forward.1} parent=1 // pred_check_branch
      %30 = sbr.rel (0) target = $region17
    $region16: #{disambiguation_lstm_forward.1} parent=1 // pred_region
      _
    $region17: #{disambiguation_lstm_forward.1} parent=1 // pred_fallthru
      _
    // Predicated region
    $region18: #{disambiguation_lstm_forward.1} parent=1 // pred_check
      _
    $region19: #{disambiguation_lstm_forward.1} parent=1 // pred_check_branch
      %32 = sbr.rel (0) target = $region21
    $region20: #{disambiguation_lstm_forward.1} parent=1 // pred_region
      _
    $region21: #{disambiguation_lstm_forward.1} parent=1 // pred_fallthru
      _
    // Predicated region
    $region22: #{disambiguation_lstm_forward.1} parent=1 // pred_check
      _
    $region23: #{disambiguation_lstm_forward.1} parent=1 // pred_check_branch
      %34 = sbr.rel (0) target = $region25
    $region24: #{disambiguation_lstm_forward.1} parent=1 // pred_region
      _
    $region25: #{disambiguation_lstm_forward.1} parent=1 // pred_fallthru
      _
    // Predicated region
    $region26: #{disambiguation_lstm_forward.1} parent=1 // pred_check
      _
    $region27: #{disambiguation_lstm_forward.1} parent=1 // pred_check_branch
      %36 = sbr.rel (0) target = $region29
    $region28: #{disambiguation_lstm_forward.1} parent=1 // pred_region
      _
    $region29: #{disambiguation_lstm_forward.1} parent=1 // pred_fallthru
      _
    // Predicated region
    $region30: #{disambiguation_lstm_forward.1} parent=1 // pred_check
      _
    $region31: #{disambiguation_lstm_forward.1} parent=1 // pred_check_branch
      %38 = sbr.rel (0) target = $region33
    $region32: #{disambiguation_lstm_forward.1} parent=1 // pred_region
      _
    $region33: #{disambiguation_lstm_forward.1} parent=1 // pred_fallthru
      _
    // Predicated region
    $region34: #{disambiguation_lstm_forward.1} parent=1 // pred_check
      _
    $region35: #{disambiguation_lstm_forward.1} parent=1 // pred_check_branch
      %40 = sbr.rel (0) target = $region37
    $region36: #{disambiguation_lstm_forward.1} parent=1 // pred_region
      %41 = dma.done [#allocation5], 32
    $region37: #{disambiguation_lstm_forward.1} parent=1 // pred_fallthru
      _
    %42 = sfence
    %vm43 = vcmask 130048
    %44 = vst.msk [vmem:[#allocation2] sm:$0xff] %vm43, 0.0
    %45 = vst.msk [vmem:[#allocation2 + $0x8] sm:$0xff] %vm43, 0.0
    %46 = vst.msk [vmem:[#allocation2 + $0x10] sm:$0xff] %vm43, 0.0
    %47 = vst.msk [vmem:[#allocation2 + $0x18] sm:$0xff] %vm43, 0.0
    %48 = vst.msk [vmem:[#allocation2 + $0x20] sm:$0xff] %vm43, 0.0
    %49 = vst.msk [vmem:[#allocation2 + $0x28] sm:$0xff] %vm43, 0.0
    %50 = vst.msk [vmem:[#allocation2 + $0x30] sm:$0xff] %vm43, 0.0
    %51 = vst.msk [vmem:[#allocation2 + $0x38] sm:$0xff] %vm43, 0.0
    %s52 = sld [smem:[#allocation3]]
    %s53 = scalar_lea.vmem %s1, %s52
    %v54 = vld [vmem:[%s53] sm:$0x1]
    %vm55 = vcmask 122880
    %56 = vst.msk [vmem:[#allocation2] sm:$0x1] %vm55, %v54
    %s57 = sld [smem:[#allocation3 + $0x80]]
    %s58 = scalar_lea.vmem %s1, %s57
    %v59 = vld [vmem:[%s58] sm:$0x1]
    %60 = vst.msk [vmem:[#allocation2 + $0x1] sm:$0x1] %vm55, %v59
    %s61 = sld [smem:[#allocation3 + $0x1]]
    %s62 = scalar_lea.vmem %s1, %s61
    %v63 = vld [vmem:[%s62] sm:$0x1]
    %64 = vst.msk [vmem:[#allocation2 + $0x8] sm:$0x1] %vm55, %v63
    %s65 = sld [smem:[#allocation3 + $0x81]]
    %s66 = scalar_lea.vmem %s1, %s65
    %v67 = vld [vmem:[%s66] sm:$0x1]
    %68 = vst.msk [vmem:[#allocation2 + $0x9] sm:$0x1] %vm55, %v67
    %s69 = sld [smem:[#allocation3 + $0x2]]
    %s70 = scalar_lea.vmem %s1, %s69
    %v71 = vld [vmem:[%s70] sm:$0x1]
    %72 = vst.msk [vmem:[#allocation2 + $0x10] sm:$0x1] %vm55, %v71
    %s73 = sld [smem:[#allocation3 + $0x82]]
    %s74 = scalar_lea.vmem %s1, %s73
    %v75 = vld [vmem:[%s74] sm:$0x1]
    %76 = vst.msk [vmem:[#allocation2 + $0x11] sm:$0x1] %vm55, %v75
    %s77 = sld [smem:[#allocation3 + $0x3]]
    %s78 = scalar_lea.vmem %s1, %s77
    %v79 = vld [vmem:[%s78] sm:$0x1]
    %80 = vst.msk [vmem:[#allocation2 + $0x18] sm:$0x1] %vm55, %v79
    %s81 = sld [smem:[#allocation3 + $0x83]]
    %s82 = scalar_lea.vmem %s1, %s81
    %v83 = vld [vmem:[%s82] sm:$0x1]
    %84 = vst.msk [vmem:[#allocation2 + $0x19] sm:$0x1] %vm55, %v83
    %s85 = sld [smem:[#allocation3 + $0x4]]
    %s86 = scalar_lea.vmem %s1, %s85
    %v87 = vld [vmem:[%s86] sm:$0x1]
    %88 = vst.msk [vmem:[#allocation2 + $0x20] sm:$0x1] %vm55, %v87
    %s89 = sld [smem:[#allocation3 + $0x84]]
    %s90 = scalar_lea.vmem %s1, %s89
    %v91 = vld [vmem:[%s90] sm:$0x1]
    %92 = vst.msk [vmem:[#allocation2 + $0x21] sm:$0x1] %vm55, %v91
    %s93 = sld [smem:[#allocation3 + $0x5]]
    %s94 = scalar_lea.vmem %s1, %s93
    %v95 = vld [vmem:[%s94] sm:$0x1]
    %96 = vst.msk [vmem:[#allocation2 + $0x28] sm:$0x1] %vm55, %v95
    %s97 = sld [smem:[#allocation3 + $0x85]]
    %s98 = scalar_lea.vmem %s1, %s97
    %v99 = vld [vmem:[%s98] sm:$0x1]
    %100 = vst.msk [vmem:[#allocation2 + $0x29] sm:$0x1] %vm55, %v99
    %s101 = sld [smem:[#allocation3 + $0x6]]
    %s102 = scalar_lea.vmem %s1, %s101
    %v103 = vld [vmem:[%s102] sm:$0x1]
    %104 = vst.msk [vmem:[#allocation2 + $0x30] sm:$0x1] %vm55, %v103
    %s105 = sld [smem:[#allocation3 + $0x86]]
    %s106 = scalar_lea.vmem %s1, %s105
    %v107 = vld [vmem:[%s106] sm:$0x1]
    %108 = vst.msk [vmem:[#allocation2 + $0x31] sm:$0x1] %vm55, %v107
    %s109 = sld [smem:[#allocation3 + $0x7]]
    %s110 = scalar_lea.vmem %s1, %s109
    %v111 = vld [vmem:[%s110] sm:$0x1]
    %112 = vst.msk [vmem:[#allocation2 + $0x38] sm:$0x1] %vm55, %v111
    %s113 = sld [smem:[#allocation3 + $0x87]]
    %s114 = scalar_lea.vmem %s1, %s113
    %v115 = vld [vmem:[%s114] sm:$0x1]
    %116 = vst.msk [vmem:[#allocation2 + $0x39] sm:$0x1] %vm55, %v115
    %v117 = vld [vmem:[#allocation2] sm:$0xff]
    %v118 = vld [vmem:[#allocation2 + $0x8] sm:$0xff]
    %v119 = vld [vmem:[#allocation2 + $0x10] sm:$0xff]
    %v120 = vld [vmem:[#allocation2 + $0x18] sm:$0xff]
    %v121 = vld [vmem:[#allocation2 + $0x20] sm:$0xff]
    %v122 = vld [vmem:[#allocation2 + $0x28] sm:$0xff]
    %v123 = vld [vmem:[#allocation2 + $0x30] sm:$0xff]
    %v124 = vld [vmem:[#allocation2 + $0x38] sm:$0xff]
    %v125 = vld [vmem:[%s2] sm:$0xff]
    %v126 = vld [vmem:[%s2 + $0x8] sm:$0xff]
    %v127 = vld [vmem:[%s2 + $0x10] sm:$0xff]
    %v128 = vld [vmem:[%s2 + $0x18] sm:$0xff]
    %v129 = vld [vmem:[%s3] sm:$0x3]
    %v131 = vlaneseq
    %v132 = vshrl.u32 %v131, 7
    %v133 = vsub.s32 0, %v132
    %v134 = vrot.slane %v129, %v133
    %v135 = vlaneseq
    %v136 = vshrl.u32 %v135, 7
    %v137 = vsub.s32 1, %v136
    %v138 = vrot.slane %v129, %v137
    %v142 = vsel %vm43, %v117, 0
    %v145 = vsel %vm43, %v118, 0
    %v148 = vsel %vm43, %v119, 0
    %v151 = vsel %vm43, %v120, 0
    %v154 = vsel %vm43, %v121, 0
    %v157 = vsel %vm43, %v122, 0
    %v160 = vsel %vm43, %v123, 0
    %v163 = vsel %vm43, %v124, 0
    %165 = vmatprep.subr.mxu0 %v126
    %166 = vmatpush1.msra.mxu0 %v125
    %167 = vmatprep.subr.mxu0 %v128
    %168 = vmatpush1.msra.mxu0 %v127
    %169 = vmatprep.subr.mxu0 0.0
    %170 = vmatpush1.msra.mxu0 0.0
    %171 = vmatprep.subr.mxu0 0.0
    %172 = vmatpush1.msra.mxu0 0.0
    %173 = vmatprep.subr.mxu0 0.0
    %174 = vmatpush1.msra.mxu0 0.0
    %175 = vmatprep.subr.mxu0 0.0
    %176 = vmatpush1.msra.mxu0 0.0
    %177 = vmatprep.subr.mxu0 0.0
    %178 = vmatpush1.msra.mxu0 0.0
    %179 = vmatprep.subr.mxu0 0.0
    %180 = vmatpush1.msra.mxu0 0.0
    %181 = vmatprep.subr.mxu0 0.0
    %182 = vmatpush1.msra.mxu0 0.0
    %183 = vmatprep.subr.mxu0 0.0
    %184 = vmatpush1.msra.mxu0 0.0
    %185 = vmatprep.subr.mxu0 0.0
    %186 = vmatpush1.msra.mxu0 0.0
    %187 = vmatprep.subr.mxu0 0.0
    %188 = vmatpush1.msra.mxu0 0.0
    %189 = vmatprep.subr.mxu0 0.0
    %190 = vmatpush1.msra.mxu0 0.0
    %191 = vmatprep.subr.mxu0 0.0
    %192 = vmatpush1.msra.mxu0 0.0
    %193 = vmatprep.subr.mxu0 0.0
    %194 = vmatpush1.msra.mxu0 0.0
    %195 = vmatprep.subr.mxu0 0.0
    %196 = vmatpush1.msra.mxu0 0.0
    %197 = vmatprep.subr.mxu0 0.0
    %198 = vmatpush1.msra.mxu0 0.0
    %199 = vmatprep.subr.mxu0 0.0
    %200 = vmatpush1.msra.mxu0 0.0
    %201 = vmatprep.subr.mxu0 0.0
    %202 = vmatpush1.msra.mxu0 0.0
    %203 = vmatprep.subr.mxu0 0.0
    %204 = vmatpush1.msra.mxu0 0.0
    %205 = vmatprep.subr.mxu0 0.0
    %206 = vmatpush1.msra.mxu0 0.0
    %207 = vmatprep.subr.mxu0 0.0
    %208 = vmatpush1.msra.mxu0 0.0
    %209 = vmatprep.subr.mxu0 0.0
    %210 = vmatpush1.msra.mxu0 0.0
    %211 = vmatprep.subr.mxu0 0.0
    %212 = vmatpush1.msra.mxu0 0.0
    %213 = vmatprep.subr.mxu0 0.0
    %214 = vmatpush1.msra.mxu0 0.0
    %215 = vmatprep.subr.mxu0 0.0
    %216 = vmatpush1.msra.mxu0 0.0
    %217 = vmatprep.subr.mxu0 0.0
    %218 = vmatpush1.msra.mxu0 0.0
    %219 = vmatprep.subr.mxu0 0.0
    %220 = vmatpush1.msra.mxu0 0.0
    %221 = vmatprep.subr.mxu0 0.0
    %222 = vmatpush1.msra.mxu0 0.0
    %223 = vmatprep.subr.mxu0 0.0
    %224 = vmatpush1.msra.mxu0 0.0
    %225 = vmatprep.subr.mxu0 0.0
    %226 = vmatpush1.msra.mxu0 0.0
    %227 = vmatprep.subr.mxu0 0.0
    %228 = vmatpush1.msra.mxu0 0.0
    %229 = vmatprep.mubr.f32.mxu0 0.0
    %230 = vmatmul.mubr.f32.gmra.mrb[0].mxu0 %v142
    %v231 = vpop.f32.mrb[0].mxu0
    %v232 = vadd.f32 %v134, %v231
    %v233 = vpop.f32.mrb[0].mxu0
    %234 = vmatprep.mubr.f32.mxu0 0.0
    %235 = vmatmul.mubr.f32.gmra.mrb[0].mxu0 %v145
    %v236 = vpop.f32.mrb[0].mxu0
    %v237 = vadd.f32 %v134, %v236
    %v238 = vpop.f32.mrb[0].mxu0
    %239 = vmatprep.mubr.f32.mxu0 0.0
    %240 = vmatmul.mubr.f32.gmra.mrb[0].mxu0 %v148
    %v241 = vpop.f32.mrb[0].mxu0
    %v242 = vadd.f32 %v134, %v241
    %v243 = vpop.f32.mrb[0].mxu0
    %244 = vmatprep.mubr.f32.mxu0 0.0
    %245 = vmatmul.mubr.f32.gmra.mrb[0].mxu0 %v151
    %v246 = vpop.f32.mrb[0].mxu0
    %v247 = vadd.f32 %v134, %v246
    %v248 = vpop.f32.mrb[0].mxu0
    %249 = vmatprep.mubr.f32.mxu0 0.0
    %250 = vmatmul.mubr.f32.gmra.mrb[0].mxu0 %v154
    %v251 = vpop.f32.mrb[0].mxu0
    %v252 = vadd.f32 %v134, %v251
    %v253 = vpop.f32.mrb[0].mxu0
    %254 = vmatprep.mubr.f32.mxu0 0.0
    %255 = vmatmul.mubr.f32.gmra.mrb[0].mxu0 %v157
    %v256 = vpop.f32.mrb[0].mxu0
    %v257 = vadd.f32 %v134, %v256
    %v258 = vpop.f32.mrb[0].mxu0
    %259 = vmatprep.mubr.f32.mxu0 0.0
    %260 = vmatmul.mubr.f32.gmra.mrb[0].mxu0 %v160
    %v261 = vpop.f32.mrb[0].mxu0
    %v262 = vadd.f32 %v134, %v261
    %v263 = vpop.f32.mrb[0].mxu0
    %264 = vmatprep.mubr.f32.mxu0 0.0
    %265 = vmatmul.mubr.f32.gmra.mrb[0].mxu0 %v163
    %v266 = vpop.f32.mrb[0].mxu0
    %v267 = vadd.f32 %v134, %v266
    %v268 = vpop.f32.mrb[0].mxu0
    %v269 = vadd.f32 %v138, %v268
    %270 = vdwg.mxu0
    %v271 = vld [vmem:[%s4] sm:$0xff]
    %v272 = vld [vmem:[%s4 + $0x8] sm:$0xff]
    %v273 = vld [vmem:[%s4 + $0x10] sm:$0xff]
    %v274 = vld [vmem:[%s4 + $0x18] sm:$0xff]
    %v275 = vlaneseq
    %v276 = vand.u32 %v275, 127
    %vm277 = vcmp.ge.s32.totalorder %v276, 64
    %vm278 = vcmp.lt.s32.totalorder %v276, 96
    %vm279 = vmand %vm277, %vm278
    %v280 = vsel %vm279, 1.0, 0.5
    %v281 = vsel %vm279, 0.0, 0.5
    %v282 = vmul.f32 %v269, %v280
    %v283 = vtanh.pop %v282
    %v284 = vmul.f32 %v283, %v280
    %v285 = vadd.f32 %v284, %v281
    %287 = vrot.lane.b32.xlu0 %v285, 64
    %v288 = vpop.permute.xlu0 %287
    %v290 = vmul.f32 %v285, %v288
    %v291 = vtanh.pop %v290
    %293 = vrot.lane.b32.xlu0 %v291, 96
    %v294 = vpop.permute.xlu0 %293
    %v296 = vmul.f32 %v285, %v294
    %v297 = vmul.f32 %v232, %v280
    %v298 = vtanh.pop %v297
    %v299 = vmul.f32 %v298, %v280
    %v300 = vadd.f32 %v299, %v281
    %302 = vrot.lane.b32.xlu0 %v300, 64
    %v303 = vpop.permute.xlu0 %302
    %v305 = vmul.f32 %v300, %v303
    %v306 = vtanh.pop %v305
    %308 = vrot.lane.b32.xlu0 %v306, 96
    %v309 = vpop.permute.xlu0 %308
    %v311 = vmul.f32 %v300, %v309
    %313 = vrot.lane.b32.xlu0 %v311, 32
    %v314 = vpop.permute.xlu0 %313
    %vm315 = vcmask 261120
    %v316 = vsel %vm315, %v314, 0
    %318 = vmatprep.subr.mxu0 0.0
    %319 = vmatpush1.msra.mxu0 %v271
    %320 = vmatprep.subr.mxu0 0.0
    %321 = vmatpush1.msra.mxu0 %v272
    %322 = vmatprep.subr.mxu0 0.0
    %323 = vmatpush1.msra.mxu0 %v273
    %324 = vmatprep.subr.mxu0 0.0
    %325 = vmatpush1.msra.mxu0 %v274
    %326 = vmatprep.subr.mxu0 0.0
    %327 = vmatpush1.msra.mxu0 0.0
    %328 = vmatprep.subr.mxu0 0.0
    %329 = vmatpush1.msra.mxu0 0.0
    %330 = vmatprep.subr.mxu0 0.0
    %331 = vmatpush1.msra.mxu0 0.0
    %332 = vmatprep.subr.mxu0 0.0
    %333 = vmatpush1.msra.mxu0 0.0
    %334 = vmatprep.subr.mxu0 0.0
    %335 = vmatpush1.msra.mxu0 0.0
    %336 = vmatprep.subr.mxu0 0.0
    %337 = vmatpush1.msra.mxu0 0.0
    %338 = vmatprep.subr.mxu0 0.0
    %339 = vmatpush1.msra.mxu0 0.0
    %340 = vmatprep.subr.mxu0 0.0
    %341 = vmatpush1.msra.mxu0 0.0
    %342 = vmatprep.subr.mxu0 0.0
    %343 = vmatpush1.msra.mxu0 0.0
    %344 = vmatprep.subr.mxu0 0.0
    %345 = vmatpush1.msra.mxu0 0.0
    %346 = vmatprep.subr.mxu0 0.0
    %347 = vmatpush1.msra.mxu0 0.0
    %348 = vmatprep.subr.mxu0 0.0
    %349 = vmatpush1.msra.mxu0 0.0
    %350 = vmatprep.subr.mxu0 0.0
    %351 = vmatpush1.msra.mxu0 0.0
    %352 = vmatprep.subr.mxu0 0.0
    %353 = vmatpush1.msra.mxu0 0.0
    %354 = vmatprep.subr.mxu0 0.0
    %355 = vmatpush1.msra.mxu0 0.0
    %356 = vmatprep.subr.mxu0 0.0
    %357 = vmatpush1.msra.mxu0 0.0
    %358 = vmatprep.subr.mxu0 0.0
    %359 = vmatpush1.msra.mxu0 0.0
    %360 = vmatprep.subr.mxu0 0.0
    %361 = vmatpush1.msra.mxu0 0.0
    %362 = vmatprep.subr.mxu0 0.0
    %363 = vmatpush1.msra.mxu0 0.0
    %364 = vmatprep.subr.mxu0 0.0
    %365 = vmatpush1.msra.mxu0 0.0
    %366 = vmatprep.subr.mxu0 0.0
    %367 = vmatpush1.msra.mxu0 0.0
    %368 = vmatprep.subr.mxu0 0.0
    %369 = vmatpush1.msra.mxu0 0.0
    %370 = vmatprep.subr.mxu0 0.0
    %371 = vmatpush1.msra.mxu0 0.0
    %372 = vmatprep.subr.mxu0 0.0
    %373 = vmatpush1.msra.mxu0 0.0
    %374 = vmatprep.subr.mxu0 0.0
    %375 = vmatpush1.msra.mxu0 0.0
    %376 = vmatprep.subr.mxu0 0.0
    %377 = vmatpush1.msra.mxu0 0.0
    %378 = vmatprep.subr.mxu0 0.0
    %379 = vmatpush1.msra.mxu0 0.0
    %380 = vmatprep.subr.mxu0 0.0
    %381 = vmatpush1.msra.mxu0 0.0
    %382 = vmatprep.mubr.f32.mxu0 0.0
    %383 = vmatmul.mubr.f32.gmra.mrb[0].mxu0 %v316
    %v384 = vpop.f32.mrb[0].mxu0
    %v385 = vadd.f32 0.0, %v384
    %v386 = vpop.f32.mrb[0].mxu0
    %387 = vdwg.mxu0
    %v388 = vadd.f32 %v237, %v385
    %v389 = vmul.f32 %v388, %v280
    %v390 = vtanh.pop %v389
    %v391 = vmul.f32 %v390, %v280
    %v392 = vadd.f32 %v391, %v281
    %394 = vrot.lane.b32.xlu0 %v305, 32
    %v395 = vpop.permute.xlu0 %394
    %v397 = vmul.f32 %v392, %v395
    %399 = vrot.lane.b32.xlu0 %v392, 64
    %v400 = vpop.permute.xlu0 %399
    %v402 = vmul.f32 %v392, %v400
    %404 = vrot.lane.b32.xlu0 %v402, 32
    %v405 = vpop.permute.xlu0 %404
    %v407 = vadd.f32 %v397, %v405
    %v408 = vtanh.pop %v407
    %410 = vrot.lane.b32.xlu0 %v408, 64
    %v411 = vpop.permute.xlu0 %410
    %v413 = vmul.f32 %v392, %v411
    %415 = vrot.lane.b32.xlu0 %v413, 32
    %v416 = vpop.permute.xlu0 %415
    %v417 = vsel %vm315, %v416, 0
    %419 = vmatprep.subr.mxu0 0.0
    %420 = vmatpush1.msra.mxu0 %v271
    %421 = vmatprep.subr.mxu0 0.0
    %422 = vmatpush1.msra.mxu0 %v272
    %423 = vmatprep.subr.mxu0 0.0
    %424 = vmatpush1.msra.mxu0 %v273
    %425 = vmatprep.subr.mxu0 0.0
    %426 = vmatpush1.msra.mxu0 %v274
    %427 = vmatprep.subr.mxu0 0.0
    %428 = vmatpush1.msra.mxu0 0.0
    %429 = vmatprep.subr.mxu0 0.0
    %430 = vmatpush1.msra.mxu0 0.0
    %431 = vmatprep.subr.mxu0 0.0
    %432 = vmatpush1.msra.mxu0 0.0
    %433 = vmatprep.subr.mxu0 0.0
    %434 = vmatpush1.msra.mxu0 0.0
    %435 = vmatprep.subr.mxu0 0.0
    %436 = vmatpush1.msra.mxu0 0.0
    %437 = vmatprep.subr.mxu0 0.0
    %438 = vmatpush1.msra.mxu0 0.0
    %439 = vmatprep.subr.mxu0 0.0
    %440 = vmatpush1.msra.mxu0 0.0
    %441 = vmatprep.subr.mxu0 0.0
    %442 = vmatpush1.msra.mxu0 0.0
    %443 = vmatprep.subr.mxu0 0.0
    %444 = vmatpush1.msra.mxu0 0.0
    %445 = vmatprep.subr.mxu0 0.0
    %446 = vmatpush1.msra.mxu0 0.0
    %447 = vmatprep.subr.mxu0 0.0
    %448 = vmatpush1.msra.mxu0 0.0
    %449 = vmatprep.subr.mxu0 0.0
    %450 = vmatpush1.msra.mxu0 0.0
    %451 = vmatprep.subr.mxu0 0.0
    %452 = vmatpush1.msra.mxu0 0.0
    %453 = vmatprep.subr.mxu0 0.0
    %454 = vmatpush1.msra.mxu0 0.0
    %455 = vmatprep.subr.mxu0 0.0
    %456 = vmatpush1.msra.mxu0 0.0
    %457 = vmatprep.subr.mxu0 0.0
    %458 = vmatpush1.msra.mxu0 0.0
    %459 = vmatprep.subr.mxu0 0.0
    %460 = vmatpush1.msra.mxu0 0.0
    %461 = vmatprep.subr.mxu0 0.0
    %462 = vmatpush1.msra.mxu0 0.0
    %463 = vmatprep.subr.mxu0 0.0
    %464 = vmatpush1.msra.mxu0 0.0
    %465 = vmatprep.subr.mxu0 0.0
    %466 = vmatpush1.msra.mxu0 0.0
    %467 = vmatprep.subr.mxu0 0.0
    %468 = vmatpush1.msra.mxu0 0.0
    %469 = vmatprep.subr.mxu0 0.0
    %470 = vmatpush1.msra.mxu0 0.0
    %471 = vmatprep.subr.mxu0 0.0
    %472 = vmatpush1.msra.mxu0 0.0
    %473 = vmatprep.subr.mxu0 0.0
    %474 = vmatpush1.msra.mxu0 0.0
    %475 = vmatprep.subr.mxu0 0.0
    %476 = vmatpush1.msra.mxu0 0.0
    %477 = vmatprep.subr.mxu0 0.0
    %478 = vmatpush1.msra.mxu0 0.0
    %479 = vmatprep.subr.mxu0 0.0
    %480 = vmatpush1.msra.mxu0 0.0
    %481 = vmatprep.subr.mxu0 0.0
    %482 = vmatpush1.msra.mxu0 0.0
    %483 = vmatprep.mubr.f32.mxu0 0.0
    %484 = vmatmul.mubr.f32.gmra.mrb[0].mxu0 %v417
    %v485 = vpop.f32.mrb[0].mxu0
    %v486 = vadd.f32 0.0, %v485
    %v487 = vpop.f32.mrb[0].mxu0
    %488 = vdwg.mxu0
    %v489 = vadd.f32 %v242, %v486
    %v490 = vmul.f32 %v489, %v280
    %v491 = vtanh.pop %v490
    %v492 = vmul.f32 %v491, %v280
    %v493 = vadd.f32 %v492, %v281
    %v494 = vmul.f32 %v493, %v407
    %496 = vrot.lane.b32.xlu0 %v493, 64
    %v497 = vpop.permute.xlu0 %496
    %v499 = vmul.f32 %v493, %v497
    %501 = vrot.lane.b32.xlu0 %v499, 32
    %v502 = vpop.permute.xlu0 %501
    %v504 = vadd.f32 %v494, %v502
    %v505 = vtanh.pop %v504
    %507 = vrot.lane.b32.xlu0 %v505, 64
    %v508 = vpop.permute.xlu0 %507
    %v510 = vmul.f32 %v493, %v508
    %512 = vrot.lane.b32.xlu0 %v510, 32
    %v513 = vpop.permute.xlu0 %512
    %v514 = vsel %vm315, %v513, 0
    %516 = vmatprep.subr.mxu0 0.0
    %517 = vmatpush1.msra.mxu0 %v271
    %518 = vmatprep.subr.mxu0 0.0
    %519 = vmatpush1.msra.mxu0 %v272
    %520 = vmatprep.subr.mxu0 0.0
    %521 = vmatpush1.msra.mxu0 %v273
    %522 = vmatprep.subr.mxu0 0.0
    %523 = vmatpush1.msra.mxu0 %v274
    %524 = vmatprep.subr.mxu0 0.0
    %525 = vmatpush1.msra.mxu0 0.0
    %526 = vmatprep.subr.mxu0 0.0
    %527 = vmatpush1.msra.mxu0 0.0
    %528 = vmatprep.subr.mxu0 0.0
    %529 = vmatpush1.msra.mxu0 0.0
    %530 = vmatprep.subr.mxu0 0.0
    %531 = vmatpush1.msra.mxu0 0.0
    %532 = vmatprep.subr.mxu0 0.0
    %533 = vmatpush1.msra.mxu0 0.0
    %534 = vmatprep.subr.mxu0 0.0
    %535 = vmatpush1.msra.mxu0 0.0
    %536 = vmatprep.subr.mxu0 0.0
    %537 = vmatpush1.msra.mxu0 0.0
    %538 = vmatprep.subr.mxu0 0.0
    %539 = vmatpush1.msra.mxu0 0.0
    %540 = vmatprep.subr.mxu0 0.0
    %541 = vmatpush1.msra.mxu0 0.0
    %542 = vmatprep.subr.mxu0 0.0
    %543 = vmatpush1.msra.mxu0 0.0
    %544 = vmatprep.subr.mxu0 0.0
    %545 = vmatpush1.msra.mxu0 0.0
    %546 = vmatprep.subr.mxu0 0.0
    %547 = vmatpush1.msra.mxu0 0.0
    %548 = vmatprep.subr.mxu0 0.0
    %549 = vmatpush1.msra.mxu0 0.0
    %550 = vmatprep.subr.mxu0 0.0
    %551 = vmatpush1.msra.mxu0 0.0
    %552 = vmatprep.subr.mxu0 0.0
    %553 = vmatpush1.msra.mxu0 0.0
    %554 = vmatprep.subr.mxu0 0.0
    %555 = vmatpush1.msra.mxu0 0.0
    %556 = vmatprep.subr.mxu0 0.0
    %557 = vmatpush1.msra.mxu0 0.0
    %558 = vmatprep.subr.mxu0 0.0
    %559 = vmatpush1.msra.mxu0 0.0
    %560 = vmatprep.subr.mxu0 0.0
    %561 = vmatpush1.msra.mxu0 0.0
    %562 = vmatprep.subr.mxu0 0.0
    %563 = vmatpush1.msra.mxu0 0.0
    %564 = vmatprep.subr.mxu0 0.0
    %565 = vmatpush1.msra.mxu0 0.0
    %566 = vmatprep.subr.mxu0 0.0
    %567 = vmatpush1.msra.mxu0 0.0
    %568 = vmatprep.subr.mxu0 0.0
    %569 = vmatpush1.msra.mxu0 0.0
    %570 = vmatprep.subr.mxu0 0.0
    %571 = vmatpush1.msra.mxu0 0.0
    %572 = vmatprep.subr.mxu0 0.0
    %573 = vmatpush1.msra.mxu0 0.0
    %574 = vmatprep.subr.mxu0 0.0
    %575 = vmatpush1.msra.mxu0 0.0
    %576 = vmatprep.subr.mxu0 0.0
    %577 = vmatpush1.msra.mxu0 0.0
    %578 = vmatprep.subr.mxu0 0.0
    %579 = vmatpush1.msra.mxu0 0.0
    %580 = vmatprep.mubr.f32.mxu0 0.0
    %581 = vmatmul.mubr.f32.gmra.mrb[0].mxu0 %v514
    %v582 = vpop.f32.mrb[0].mxu0
    %v583 = vadd.f32 0.0, %v582
    %v584 = vpop.f32.mrb[0].mxu0
    %585 = vdwg.mxu0
    %v586 = vadd.f32 %v247, %v583
    %v587 = vmul.f32 %v586, %v280
    %v588 = vtanh.pop %v587
    %v589 = vmul.f32 %v588, %v280
    %v590 = vadd.f32 %v589, %v281
    %v591 = vmul.f32 %v590, %v504
    %593 = vrot.lane.b32.xlu0 %v590, 64
    %v594 = vpop.permute.xlu0 %593
    %v596 = vmul.f32 %v590, %v594
    %598 = vrot.lane.b32.xlu0 %v596, 32
    %v599 = vpop.permute.xlu0 %598
    %v601 = vadd.f32 %v591, %v599
    %v602 = vtanh.pop %v601
    %604 = vrot.lane.b32.xlu0 %v602, 64
    %v605 = vpop.permute.xlu0 %604
    %v607 = vmul.f32 %v590, %v605
    %609 = vrot.lane.b32.xlu0 %v607, 32
    %v610 = vpop.permute.xlu0 %609
    %v611 = vsel %vm315, %v610, 0
    %613 = vmatprep.subr.mxu0 0.0
    %614 = vmatpush1.msra.mxu0 %v271
    %615 = vmatprep.subr.mxu0 0.0
    %616 = vmatpush1.msra.mxu0 %v272
    %617 = vmatprep.subr.mxu0 0.0
    %618 = vmatpush1.msra.mxu0 %v273
    %619 = vmatprep.subr.mxu0 0.0
    %620 = vmatpush1.msra.mxu0 %v274
    %621 = vmatprep.subr.mxu0 0.0
    %622 = vmatpush1.msra.mxu0 0.0
    %623 = vmatprep.subr.mxu0 0.0
    %624 = vmatpush1.msra.mxu0 0.0
    %625 = vmatprep.subr.mxu0 0.0
    %626 = vmatpush1.msra.mxu0 0.0
    %627 = vmatprep.subr.mxu0 0.0
    %628 = vmatpush1.msra.mxu0 0.0
    %629 = vmatprep.subr.mxu0 0.0
    %630 = vmatpush1.msra.mxu0 0.0
    %631 = vmatprep.subr.mxu0 0.0
    %632 = vmatpush1.msra.mxu0 0.0
    %633 = vmatprep.subr.mxu0 0.0
    %634 = vmatpush1.msra.mxu0 0.0
    %635 = vmatprep.subr.mxu0 0.0
    %636 = vmatpush1.msra.mxu0 0.0
    %637 = vmatprep.subr.mxu0 0.0
    %638 = vmatpush1.msra.mxu0 0.0
    %639 = vmatprep.subr.mxu0 0.0
    %640 = vmatpush1.msra.mxu0 0.0
    %641 = vmatprep.subr.mxu0 0.0
    %642 = vmatpush1.msra.mxu0 0.0
    %643 = vmatprep.subr.mxu0 0.0
    %644 = vmatpush1.msra.mxu0 0.0
    %645 = vmatprep.subr.mxu0 0.0
    %646 = vmatpush1.msra.mxu0 0.0
    %647 = vmatprep.subr.mxu0 0.0
    %648 = vmatpush1.msra.mxu0 0.0
    %649 = vmatprep.subr.mxu0 0.0
    %650 = vmatpush1.msra.mxu0 0.0
    %651 = vmatprep.subr.mxu0 0.0
    %652 = vmatpush1.msra.mxu0 0.0
    %653 = vmatprep.subr.mxu0 0.0
    %654 = vmatpush1.msra.mxu0 0.0
    %655 = vmatprep.subr.mxu0 0.0
    %656 = vmatpush1.msra.mxu0 0.0
    %657 = vmatprep.subr.mxu0 0.0
    %658 = vmatpush1.msra.mxu0 0.0
    %659 = vmatprep.subr.mxu0 0.0
    %660 = vmatpush1.msra.mxu0 0.0
    %661 = vmatprep.subr.mxu0 0.0
    %662 = vmatpush1.msra.mxu0 0.0
    %663 = vmatprep.subr.mxu0 0.0
    %664 = vmatpush1.msra.mxu0 0.0
    %665 = vmatprep.subr.mxu0 0.0
    %666 = vmatpush1.msra.mxu0 0.0
    %667 = vmatprep.subr.mxu0 0.0
    %668 = vmatpush1.msra.mxu0 0.0
    %669 = vmatprep.subr.mxu0 0.0
    %670 = vmatpush1.msra.mxu0 0.0
    %671 = vmatprep.subr.mxu0 0.0
    %672 = vmatpush1.msra.mxu0 0.0
    %673 = vmatprep.subr.mxu0 0.0
    %674 = vmatpush1.msra.mxu0 0.0
    %675 = vmatprep.subr.mxu0 0.0
    %676 = vmatpush1.msra.mxu0 0.0
    %677 = vmatprep.mubr.f32.mxu0 0.0
    %678 = vmatmul.mubr.f32.gmra.mrb[0].mxu0 %v611
    %v679 = vpop.f32.mrb[0].mxu0
    %v680 = vadd.f32 0.0, %v679
    %v681 = vpop.f32.mrb[0].mxu0
    %682 = vdwg.mxu0
    %v683 = vadd.f32 %v252, %v680
    %v684 = vmul.f32 %v683, %v280
    %v685 = vtanh.pop %v684
    %v686 = vmul.f32 %v685, %v280
    %v687 = vadd.f32 %v686, %v281
    %v688 = vmul.f32 %v687, %v601
    %690 = vrot.lane.b32.xlu0 %v687, 64
    %v691 = vpop.permute.xlu0 %690
    %v693 = vmul.f32 %v687, %v691
    %695 = vrot.lane.b32.xlu0 %v693, 32
    %v696 = vpop.permute.xlu0 %695
    %v698 = vadd.f32 %v688, %v696
    %v699 = vtanh.pop %v698
    %701 = vrot.lane.b32.xlu0 %v699, 64
    %v702 = vpop.permute.xlu0 %701
    %v704 = vmul.f32 %v687, %v702
    %706 = vrot.lane.b32.xlu0 %v704, 32
    %v707 = vpop.permute.xlu0 %706
    %v708 = vsel %vm315, %v707, 0
    %710 = vmatprep.subr.mxu0 0.0
    %711 = vmatpush1.msra.mxu0 %v271
    %712 = vmatprep.subr.mxu0 0.0
    %713 = vmatpush1.msra.mxu0 %v272
    %714 = vmatprep.subr.mxu0 0.0
    %715 = vmatpush1.msra.mxu0 %v273
    %716 = vmatprep.subr.mxu0 0.0
    %717 = vmatpush1.msra.mxu0 %v274
    %718 = vmatprep.subr.mxu0 0.0
    %719 = vmatpush1.msra.mxu0 0.0
    %720 = vmatprep.subr.mxu0 0.0
    %721 = vmatpush1.msra.mxu0 0.0
    %722 = vmatprep.subr.mxu0 0.0
    %723 = vmatpush1.msra.mxu0 0.0
    %724 = vmatprep.subr.mxu0 0.0
    %725 = vmatpush1.msra.mxu0 0.0
    %726 = vmatprep.subr.mxu0 0.0
    %727 = vmatpush1.msra.mxu0 0.0
    %728 = vmatprep.subr.mxu0 0.0
    %729 = vmatpush1.msra.mxu0 0.0
    %730 = vmatprep.subr.mxu0 0.0
    %731 = vmatpush1.msra.mxu0 0.0
    %732 = vmatprep.subr.mxu0 0.0
    %733 = vmatpush1.msra.mxu0 0.0
    %734 = vmatprep.subr.mxu0 0.0
    %735 = vmatpush1.msra.mxu0 0.0
    %736 = vmatprep.subr.mxu0 0.0
    %737 = vmatpush1.msra.mxu0 0.0
    %738 = vmatprep.subr.mxu0 0.0
    %739 = vmatpush1.msra.mxu0 0.0
    %740 = vmatprep.subr.mxu0 0.0
    %741 = vmatpush1.msra.mxu0 0.0
    %742 = vmatprep.subr.mxu0 0.0
    %743 = vmatpush1.msra.mxu0 0.0
    %744 = vmatprep.subr.mxu0 0.0
    %745 = vmatpush1.msra.mxu0 0.0
    %746 = vmatprep.subr.mxu0 0.0
    %747 = vmatpush1.msra.mxu0 0.0
    %748 = vmatprep.subr.mxu0 0.0
    %749 = vmatpush1.msra.mxu0 0.0
    %750 = vmatprep.subr.mxu0 0.0
    %751 = vmatpush1.msra.mxu0 0.0
    %752 = vmatprep.subr.mxu0 0.0
    %753 = vmatpush1.msra.mxu0 0.0
    %754 = vmatprep.subr.mxu0 0.0
    %755 = vmatpush1.msra.mxu0 0.0
    %756 = vmatprep.subr.mxu0 0.0
    %757 = vmatpush1.msra.mxu0 0.0
    %758 = vmatprep.subr.mxu0 0.0
    %759 = vmatpush1.msra.mxu0 0.0
    %760 = vmatprep.subr.mxu0 0.0
    %761 = vmatpush1.msra.mxu0 0.0
    %762 = vmatprep.subr.mxu0 0.0
    %763 = vmatpush1.msra.mxu0 0.0
    %764 = vmatprep.subr.mxu0 0.0
    %765 = vmatpush1.msra.mxu0 0.0
    %766 = vmatprep.subr.mxu0 0.0
    %767 = vmatpush1.msra.mxu0 0.0
    %768 = vmatprep.subr.mxu0 0.0
    %769 = vmatpush1.msra.mxu0 0.0
    %770 = vmatprep.subr.mxu0 0.0
    %771 = vmatpush1.msra.mxu0 0.0
    %772 = vmatprep.subr.mxu0 0.0
    %773 = vmatpush1.msra.mxu0 0.0
    %774 = vmatprep.mubr.f32.mxu0 0.0
    %775 = vmatmul.mubr.f32.gmra.mrb[0].mxu0 %v708
    %v776 = vpop.f32.mrb[0].mxu0
    %v777 = vadd.f32 0.0, %v776
    %v778 = vpop.f32.mrb[0].mxu0
    %779 = vdwg.mxu0
    %v780 = vadd.f32 %v257, %v777
    %v781 = vmul.f32 %v780, %v280
    %v782 = vtanh.pop %v781
    %v783 = vmul.f32 %v782, %v280
    %v784 = vadd.f32 %v783, %v281
    %v785 = vmul.f32 %v784, %v698
    %787 = vrot.lane.b32.xlu0 %v784, 64
    %v788 = vpop.permute.xlu0 %787
    %v790 = vmul.f32 %v784, %v788
    %792 = vrot.lane.b32.xlu0 %v790, 32
    %v793 = vpop.permute.xlu0 %792
    %v795 = vadd.f32 %v785, %v793
    %v796 = vtanh.pop %v795
    %798 = vrot.lane.b32.xlu0 %v796, 64
    %v799 = vpop.permute.xlu0 %798
    %v801 = vmul.f32 %v784, %v799
    %803 = vrot.lane.b32.xlu0 %v801, 32
    %v804 = vpop.permute.xlu0 %803
    %v805 = vsel %vm315, %v804, 0
    %807 = vmatprep.subr.mxu0 0.0
    %808 = vmatpush1.msra.mxu0 %v271
    %809 = vmatprep.subr.mxu0 0.0
    %810 = vmatpush1.msra.mxu0 %v272
    %811 = vmatprep.subr.mxu0 0.0
    %812 = vmatpush1.msra.mxu0 %v273
    %813 = vmatprep.subr.mxu0 0.0
    %814 = vmatpush1.msra.mxu0 %v274
    %815 = vmatprep.subr.mxu0 0.0
    %816 = vmatpush1.msra.mxu0 0.0
    %817 = vmatprep.subr.mxu0 0.0
    %818 = vmatpush1.msra.mxu0 0.0
    %819 = vmatprep.subr.mxu0 0.0
    %820 = vmatpush1.msra.mxu0 0.0
    %821 = vmatprep.subr.mxu0 0.0
    %822 = vmatpush1.msra.mxu0 0.0
    %823 = vmatprep.subr.mxu0 0.0
    %824 = vmatpush1.msra.mxu0 0.0
    %825 = vmatprep.subr.mxu0 0.0
    %826 = vmatpush1.msra.mxu0 0.0
    %827 = vmatprep.subr.mxu0 0.0
    %828 = vmatpush1.msra.mxu0 0.0
    %829 = vmatprep.subr.mxu0 0.0
    %830 = vmatpush1.msra.mxu0 0.0
    %831 = vmatprep.subr.mxu0 0.0
    %832 = vmatpush1.msra.mxu0 0.0
    %833 = vmatprep.subr.mxu0 0.0
    %834 = vmatpush1.msra.mxu0 0.0
    %835 = vmatprep.subr.mxu0 0.0
    %836 = vmatpush1.msra.mxu0 0.0
    %837 = vmatprep.subr.mxu0 0.0
    %838 = vmatpush1.msra.mxu0 0.0
    %839 = vmatprep.subr.mxu0 0.0
    %840 = vmatpush1.msra.mxu0 0.0
    %841 = vmatprep.subr.mxu0 0.0
    %842 = vmatpush1.msra.mxu0 0.0
    %843 = vmatprep.subr.mxu0 0.0
    %844 = vmatpush1.msra.mxu0 0.0
    %845 = vmatprep.subr.mxu0 0.0
    %846 = vmatpush1.msra.mxu0 0.0
    %847 = vmatprep.subr.mxu0 0.0
    %848 = vmatpush1.msra.mxu0 0.0
    %849 = vmatprep.subr.mxu0 0.0
    %850 = vmatpush1.msra.mxu0 0.0
    %851 = vmatprep.subr.mxu0 0.0
    %852 = vmatpush1.msra.mxu0 0.0
    %853 = vmatprep.subr.mxu0 0.0
    %854 = vmatpush1.msra.mxu0 0.0
    %855 = vmatprep.subr.mxu0 0.0
    %856 = vmatpush1.msra.mxu0 0.0
    %857 = vmatprep.subr.mxu0 0.0
    %858 = vmatpush1.msra.mxu0 0.0
    %859 = vmatprep.subr.mxu0 0.0
    %860 = vmatpush1.msra.mxu0 0.0
    %861 = vmatprep.subr.mxu0 0.0
    %862 = vmatpush1.msra.mxu0 0.0
    %863 = vmatprep.subr.mxu0 0.0
    %864 = vmatpush1.msra.mxu0 0.0
    %865 = vmatprep.subr.mxu0 0.0
    %866 = vmatpush1.msra.mxu0 0.0
    %867 = vmatprep.subr.mxu0 0.0
    %868 = vmatpush1.msra.mxu0 0.0
    %869 = vmatprep.subr.mxu0 0.0
    %870 = vmatpush1.msra.mxu0 0.0
    %871 = vmatprep.mubr.f32.mxu0 0.0
    %872 = vmatmul.mubr.f32.gmra.mrb[0].mxu0 %v805
    %v873 = vpop.f32.mrb[0].mxu0
    %v874 = vadd.f32 0.0, %v873
    %v875 = vpop.f32.mrb[0].mxu0
    %876 = vdwg.mxu0
    %v877 = vadd.f32 %v262, %v874
    %v878 = vmul.f32 %v877, %v280
    %v879 = vtanh.pop %v878
    %v880 = vmul.f32 %v879, %v280
    %v881 = vadd.f32 %v880, %v281
    %v882 = vmul.f32 %v881, %v795
    %884 = vrot.lane.b32.xlu0 %v881, 64
    %v885 = vpop.permute.xlu0 %884
    %v887 = vmul.f32 %v881, %v885
    %889 = vrot.lane.b32.xlu0 %v887, 32
    %v890 = vpop.permute.xlu0 %889
    %v892 = vadd.f32 %v882, %v890
    %v893 = vtanh.pop %v892
    %895 = vrot.lane.b32.xlu0 %v893, 64
    %v896 = vpop.permute.xlu0 %895
    %v898 = vmul.f32 %v881, %v896
    %900 = vrot.lane.b32.xlu0 %v898, 32
    %v901 = vpop.permute.xlu0 %900
    %v902 = vsel %vm315, %v901, 0
    %904 = vmatprep.subr.mxu0 0.0
    %905 = vmatpush1.msra.mxu0 %v271
    %906 = vmatprep.subr.mxu0 0.0
    %907 = vmatpush1.msra.mxu0 %v272
    %908 = vmatprep.subr.mxu0 0.0
    %909 = vmatpush1.msra.mxu0 %v273
    %910 = vmatprep.subr.mxu0 0.0
    %911 = vmatpush1.msra.mxu0 %v274
    %912 = vmatprep.subr.mxu0 0.0
    %913 = vmatpush1.msra.mxu0 0.0
    %914 = vmatprep.subr.mxu0 0.0
    %915 = vmatpush1.msra.mxu0 0.0
    %916 = vmatprep.subr.mxu0 0.0
    %917 = vmatpush1.msra.mxu0 0.0
    %918 = vmatprep.subr.mxu0 0.0
    %919 = vmatpush1.msra.mxu0 0.0
    %920 = vmatprep.subr.mxu0 0.0
    %921 = vmatpush1.msra.mxu0 0.0
    %922 = vmatprep.subr.mxu0 0.0
    %923 = vmatpush1.msra.mxu0 0.0
    %924 = vmatprep.subr.mxu0 0.0
    %925 = vmatpush1.msra.mxu0 0.0
    %926 = vmatprep.subr.mxu0 0.0
    %927 = vmatpush1.msra.mxu0 0.0
    %928 = vmatprep.subr.mxu0 0.0
    %929 = vmatpush1.msra.mxu0 0.0
    %930 = vmatprep.subr.mxu0 0.0
    %931 = vmatpush1.msra.mxu0 0.0
    %932 = vmatprep.subr.mxu0 0.0
    %933 = vmatpush1.msra.mxu0 0.0
    %934 = vmatprep.subr.mxu0 0.0
    %935 = vmatpush1.msra.mxu0 0.0
    %936 = vmatprep.subr.mxu0 0.0
    %937 = vmatpush1.msra.mxu0 0.0
    %938 = vmatprep.subr.mxu0 0.0
    %939 = vmatpush1.msra.mxu0 0.0
    %940 = vmatprep.subr.mxu0 0.0
    %941 = vmatpush1.msra.mxu0 0.0
    %942 = vmatprep.subr.mxu0 0.0
    %943 = vmatpush1.msra.mxu0 0.0
    %944 = vmatprep.subr.mxu0 0.0
    %945 = vmatpush1.msra.mxu0 0.0
    %946 = vmatprep.subr.mxu0 0.0
    %947 = vmatpush1.msra.mxu0 0.0
    %948 = vmatprep.subr.mxu0 0.0
    %949 = vmatpush1.msra.mxu0 0.0
    %950 = vmatprep.subr.mxu0 0.0
    %951 = vmatpush1.msra.mxu0 0.0
    %952 = vmatprep.subr.mxu0 0.0
    %953 = vmatpush1.msra.mxu0 0.0
    %954 = vmatprep.subr.mxu0 0.0
    %955 = vmatpush1.msra.mxu0 0.0
    %956 = vmatprep.subr.mxu0 0.0
    %957 = vmatpush1.msra.mxu0 0.0
    %958 = vmatprep.subr.mxu0 0.0
    %959 = vmatpush1.msra.mxu0 0.0
    %960 = vmatprep.subr.mxu0 0.0
    %961 = vmatpush1.msra.mxu0 0.0
    %962 = vmatprep.subr.mxu0 0.0
    %963 = vmatpush1.msra.mxu0 0.0
    %964 = vmatprep.subr.mxu0 0.0
    %965 = vmatpush1.msra.mxu0 0.0
    %966 = vmatprep.subr.mxu0 0.0
    %967 = vmatpush1.msra.mxu0 0.0
    %968 = vmatprep.mubr.f32.mxu0 0.0
    %969 = vmatmul.mubr.f32.gmra.mrb[0].mxu0 %v902
    %v970 = vpop.f32.mrb[0].mxu0
    %v971 = vadd.f32 0.0, %v970
    %v972 = vpop.f32.mrb[0].mxu0
    %973 = vdwg.mxu0
    %v974 = vadd.f32 %v267, %v971
    %v975 = vmul.f32 %v974, %v280
    %v976 = vtanh.pop %v975
    %v977 = vmul.f32 %v976, %v280
    %v978 = vadd.f32 %v977, %v281
    %v979 = vmul.f32 %v978, %v892
    %981 = vrot.lane.b32.xlu0 %v978, 64
    %v982 = vpop.permute.xlu0 %981
    %v984 = vmul.f32 %v978, %v982
    %986 = vrot.lane.b32.xlu0 %v984, 32
    %v987 = vpop.permute.xlu0 %986
    %v989 = vadd.f32 %v979, %v987
    %v990 = vtanh.pop %v989
    %992 = vrot.lane.b32.xlu0 %v990, 64
    %v993 = vpop.permute.xlu0 %992
    %v995 = vmul.f32 %v978, %v993
    %v996 = vld [vmem:[%s5] sm:$0xff]
    %v997 = vld [vmem:[%s5 + $0x8] sm:$0xff]
    %v998 = vld [vmem:[%s5 + $0x10] sm:$0xff]
    %v999 = vld [vmem:[%s5 + $0x18] sm:$0xff]
    %v1000 = vld [vmem:[%s6] sm:$0xff]
    %v1001 = vld [vmem:[%s6 + $0x8] sm:$0xff]
    %v1002 = vld [vmem:[%s6 + $0x10] sm:$0xff]
    %v1003 = vld [vmem:[%s6 + $0x18] sm:$0xff]
    %1005 = vrot.lane.b32.xlu0 %v296, 32
    %v1006 = vpop.permute.xlu0 %1005
    %v1007 = vsel %vm315, %v1006, 0
    %1009 = vmatprep.subr.mxu0 0.0
    %1010 = vmatpush1.msra.mxu0 %v1000
    %1011 = vmatprep.subr.mxu0 0.0
    %1012 = vmatpush1.msra.mxu0 %v1001
    %1013 = vmatprep.subr.mxu0 0.0
    %1014 = vmatpush1.msra.mxu0 %v1002
    %1015 = vmatprep.subr.mxu0 0.0
    %1016 = vmatpush1.msra.mxu0 %v1003
    %1017 = vmatprep.subr.mxu0 0.0
    %1018 = vmatpush1.msra.mxu0 0.0
    %1019 = vmatprep.subr.mxu0 0.0
    %1020 = vmatpush1.msra.mxu0 0.0
    %1021 = vmatprep.subr.mxu0 0.0
    %1022 = vmatpush1.msra.mxu0 0.0
    %1023 = vmatprep.subr.mxu0 0.0
    %1024 = vmatpush1.msra.mxu0 0.0
    %1025 = vmatprep.subr.mxu0 0.0
    %1026 = vmatpush1.msra.mxu0 0.0
    %1027 = vmatprep.subr.mxu0 0.0
    %1028 = vmatpush1.msra.mxu0 0.0
    %1029 = vmatprep.subr.mxu0 0.0
    %1030 = vmatpush1.msra.mxu0 0.0
    %1031 = vmatprep.subr.mxu0 0.0
    %1032 = vmatpush1.msra.mxu0 0.0
    %1033 = vmatprep.subr.mxu0 0.0
    %1034 = vmatpush1.msra.mxu0 0.0
    %1035 = vmatprep.subr.mxu0 0.0
    %1036 = vmatpush1.msra.mxu0 0.0
    %1037 = vmatprep.subr.mxu0 0.0
    %1038 = vmatpush1.msra.mxu0 0.0
    %1039 = vmatprep.subr.mxu0 0.0
    %1040 = vmatpush1.msra.mxu0 0.0
    %1041 = vmatprep.subr.mxu0 0.0
    %1042 = vmatpush1.msra.mxu0 0.0
    %1043 = vmatprep.subr.mxu0 0.0
    %1044 = vmatpush1.msra.mxu0 0.0
    %1045 = vmatprep.subr.mxu0 0.0
    %1046 = vmatpush1.msra.mxu0 0.0
    %1047 = vmatprep.subr.mxu0 0.0
    %1048 = vmatpush1.msra.mxu0 0.0
    %1049 = vmatprep.subr.mxu0 0.0
    %1050 = vmatpush1.msra.mxu0 0.0
    %1051 = vmatprep.subr.mxu0 0.0
    %1052 = vmatpush1.msra.mxu0 0.0
    %1053 = vmatprep.subr.mxu0 0.0
    %1054 = vmatpush1.msra.mxu0 0.0
    %1055 = vmatprep.subr.mxu0 0.0
    %1056 = vmatpush1.msra.mxu0 0.0
    %1057 = vmatprep.subr.mxu0 0.0
    %1058 = vmatpush1.msra.mxu0 0.0
    %1059 = vmatprep.subr.mxu0 0.0
    %1060 = vmatpush1.msra.mxu0 0.0
    %1061 = vmatprep.subr.mxu0 0.0
    %1062 = vmatpush1.msra.mxu0 0.0
    %1063 = vmatprep.subr.mxu0 0.0
    %1064 = vmatpush1.msra.mxu0 0.0
    %1065 = vmatprep.subr.mxu0 0.0
    %1066 = vmatpush1.msra.mxu0 0.0
    %1067 = vmatprep.subr.mxu0 0.0
    %1068 = vmatpush1.msra.mxu0 0.0
    %1069 = vmatprep.subr.mxu0 0.0
    %1070 = vmatpush1.msra.mxu0 0.0
    %1071 = vmatprep.subr.mxu0 0.0
    %1072 = vmatpush1.msra.mxu0 0.0
    %1073 = vmatprep.mubr.f32.mxu0 0.0
    %1074 = vmatmul.mubr.f32.gmra.mrb[0].mxu0 %v1007
    %v1075 = vpop.f32.mrb[0].mxu0
    %v1076 = vadd.f32 0.0, %v1075
    %v1077 = vpop.f32.mrb[0].mxu0
    %1078 = vdwg.mxu0
    %1080 = vrot.lane.b32.xlu0 %v995, 32
    %v1081 = vpop.permute.xlu0 %1080
    %v1082 = vsel %vm315, %v1081, 0
    %1084 = vmatprep.subr.mxu0 0.0
    %1085 = vmatpush1.msra.mxu0 %v996
    %1086 = vmatprep.subr.mxu0 0.0
    %1087 = vmatpush1.msra.mxu0 %v997
    %1088 = vmatprep.subr.mxu0 0.0
    %1089 = vmatpush1.msra.mxu0 %v998
    %1090 = vmatprep.subr.mxu0 0.0
    %1091 = vmatpush1.msra.mxu0 %v999
    %1092 = vmatprep.subr.mxu0 0.0
    %1093 = vmatpush1.msra.mxu0 0.0
    %1094 = vmatprep.subr.mxu0 0.0
    %1095 = vmatpush1.msra.mxu0 0.0
    %1096 = vmatprep.subr.mxu0 0.0
    %1097 = vmatpush1.msra.mxu0 0.0
    %1098 = vmatprep.subr.mxu0 0.0
    %1099 = vmatpush1.msra.mxu0 0.0
    %1100 = vmatprep.subr.mxu0 0.0
    %1101 = vmatpush1.msra.mxu0 0.0
    %1102 = vmatprep.subr.mxu0 0.0
    %1103 = vmatpush1.msra.mxu0 0.0
    %1104 = vmatprep.subr.mxu0 0.0
    %1105 = vmatpush1.msra.mxu0 0.0
    %1106 = vmatprep.subr.mxu0 0.0
    %1107 = vmatpush1.msra.mxu0 0.0
    %1108 = vmatprep.subr.mxu0 0.0
    %1109 = vmatpush1.msra.mxu0 0.0
    %1110 = vmatprep.subr.mxu0 0.0
    %1111 = vmatpush1.msra.mxu0 0.0
    %1112 = vmatprep.subr.mxu0 0.0
    %1113 = vmatpush1.msra.mxu0 0.0
    %1114 = vmatprep.subr.mxu0 0.0
    %1115 = vmatpush1.msra.mxu0 0.0
    %1116 = vmatprep.subr.mxu0 0.0
    %1117 = vmatpush1.msra.mxu0 0.0
    %1118 = vmatprep.subr.mxu0 0.0
    %1119 = vmatpush1.msra.mxu0 0.0
    %1120 = vmatprep.subr.mxu0 0.0
    %1121 = vmatpush1.msra.mxu0 0.0
    %1122 = vmatprep.subr.mxu0 0.0
    %1123 = vmatpush1.msra.mxu0 0.0
    %1124 = vmatprep.subr.mxu0 0.0
    %1125 = vmatpush1.msra.mxu0 0.0
    %1126 = vmatprep.subr.mxu0 0.0
    %1127 = vmatpush1.msra.mxu0 0.0
    %1128 = vmatprep.subr.mxu0 0.0
    %1129 = vmatpush1.msra.mxu0 0.0
    %1130 = vmatprep.subr.mxu0 0.0
    %1131 = vmatpush1.msra.mxu0 0.0
    %1132 = vmatprep.subr.mxu0 0.0
    %1133 = vmatpush1.msra.mxu0 0.0
    %1134 = vmatprep.subr.mxu0 0.0
    %1135 = vmatpush1.msra.mxu0 0.0
    %1136 = vmatprep.subr.mxu0 0.0
    %1137 = vmatpush1.msra.mxu0 0.0
    %1138 = vmatprep.subr.mxu0 0.0
    %1139 = vmatpush1.msra.mxu0 0.0
    %1140 = vmatprep.subr.mxu0 0.0
    %1141 = vmatpush1.msra.mxu0 0.0
    %1142 = vmatprep.subr.mxu0 0.0
    %1143 = vmatpush1.msra.mxu0 0.0
    %1144 = vmatprep.subr.mxu0 0.0
    %1145 = vmatpush1.msra.mxu0 0.0
    %1146 = vmatprep.subr.mxu0 0.0
    %1147 = vmatpush1.msra.mxu0 0.0
    %1148 = vmatprep.mubr.f32.mxu0 0.0
    %1149 = vmatmul.mubr.f32.gmra.mrb[0].mxu0 %v1082
    %v1150 = vpop.f32.mrb[0].mxu0
    %v1151 = vadd.f32 %v1076, %v1150
    %v1152 = vpop.f32.mrb[0].mxu0
    %1153 = vdwg.mxu0
    %v1154 = vld [vmem:[%s7] sm:$0x1]
    %v1156 = vlaneseq
    %v1157 = vshrl.u32 %v1156, 7
    %v1158 = vsub.s32 0, %v1157
    %v1159 = vrot.slane %v1154, %v1158
    %v1161 = vadd.f32 %v1151, %v1159
    %vm1162 = vcmask 33792
    %1163 = vst.msk [vmem:[#allocation6] sm:$0x3] %vm1162, %v1161
    // Predicated region
    $region38: #{disambiguation_lstm_forward.1} parent=1 // pred_check
      _
    $region39: #{disambiguation_lstm_forward.1} parent=1 // pred_check_branch
      %1165 = sbr.rel (0) target = $region41
    $region40: #{disambiguation_lstm_forward.1} parent=1 // pred_region
      %s1167 = ssub.s32 32, 32
      %1168 = vsyncadd [#allocation4], %s1167
      %s1170 = sshll.u32 [#allocation6], 4
      %s1171 = int_to_ptr.vmem [resolvable:$true] %s1170
      %1173 = dma.vmem_to_hbm [thread:$0]  %s1171, 32, %s8, [#allocation4]
    $region41: #{disambiguation_lstm_forward.1} parent=1 // pred_fallthru
      _
    // Predicated region
    $region42: #{disambiguation_lstm_forward.1} parent=1 // pred_check
      _
    $region43: #{disambiguation_lstm_forward.1} parent=1 // pred_check_branch
      %1175 = sbr.rel (0) target = $region45
    $region44: #{disambiguation_lstm_forward.1} parent=1 // pred_region
      %1176 = dma.done [#allocation4], 32
    $region45: #{disambiguation_lstm_forward.1} parent=1 // pred_fallthru
      _
    %1177 = vsyncpa [#allocation4], 1
    %1178 = vsyncpa [#allocation5], 1

</llo_original>
